<compile_context>
chip_gen: v6e
topology: v6e:2x2x1
jax: 0.10.0
libtpu: 0.0.40
codegen_flags: <defaults>
</compile_context>

<pallas_src>
import jax
import jax.numpy as jnp
import numpy as np
from jax.experimental import pallas as pl
from jax.experimental.pallas import tpu as pltpu

NUM_FILTERS = 8
KERNEL_SIZES = (3, 4, 5)


def _sentiment_cnn_kernel(emb_ref, w_all_ref, bconv_ref, wfct_ref, bfc_ref,
                          out_ref):
    """Fused conv(one matmul) + shift/add + ReLU + max-over-time + FC + sigmoid."""
    F = NUM_FILTERS
    Bt, T, D = emb_ref.shape
    O = out_ref.shape[-1]

    # --- conv stage: a single tall MXU matmul covering all branches & taps ---
    x2d = emb_ref[...].reshape(Bt * T, D)
    p = jnp.dot(x2d, w_all_ref[...], preferred_element_type=jnp.float32)
    p = p.reshape(Bt, T, sum(KERNEL_SIZES) * F)           # (Bt, T, 12F) f32

    bconv = bconv_ref[...]                                # (3, F) f32

    feats = []
    blk = 0
    for i, k in enumerate(KERNEL_SIZES):
        t_out = T - k + 1
        # conv with kernel size k == sum over k time-shifted per-tap projections
        s = p[:, 0:t_out, blk * F:(blk + 1) * F]
        for j in range(1, k):
            s = s + p[:, j:j + t_out, (blk + j) * F:(blk + j + 1) * F]
        blk += k
        pooled = jnp.max(s, axis=1)                       # max over time -> (Bt, F)
        # bias constant over time, ReLU monotone => commute with the max
        feats.append(jnp.maximum(pooled + bconv[i:i + 1, :], 0.0))

    feat = jnp.concatenate(feats, axis=-1)                # (Bt, 3F) f32

    # --- FC + sigmoid --------------------------------------------------------
    wfct = wfct_ref[...]                                  # (O, 3F) f32
    if O == 1:
        # O == 1: FC on the VPU (broadcast mul + lane reduce), no MXU op needed
        logit = jnp.sum(feat * wfct, axis=-1, keepdims=True)
    else:
        logit = jax.lax.dot_general(
            feat, wfct, (((1,), (1,)), ((), ())),
            preferred_element_type=jnp.float32)
    logit = logit + bfc_ref[...]
    out_ref[...] = jax.nn.sigmoid(logit).astype(out_ref.dtype)


def sentiment_cnn_forward(token_ids, params, *, batch_tile=None,
                          compute_dtype=jnp.float32):
    """Forward pass: embedding gather (plain-JAX glue) + fused Pallas kernel."""
    # Embedding lookup of the frozen table is a gather -> plain-JAX glue.
    embeds = jnp.take(params['emb_table'], token_ids, axis=0)
    embeds = embeds.astype(compute_dtype)                 # (B, T, D)
    # TODO(synk): training-mode dropout (random mask + 1/(1-p) scaling) is not
    # implemented; eval-mode dropout is identity, which is what is fused here.

    B, T, D = embeds.shape
    if T < max(KERNEL_SIZES):
        raise ValueError(
            f"seq_len={T} must be >= max kernel size {max(KERNEL_SIZES)}")

    F = NUM_FILTERS
    n_branches = len(KERNEL_SIZES)
    n_taps = sum(KERNEL_SIZES)
    O = params['b_fc'].shape[-1]

    # Fuse all conv taps into one (D, n_taps*F) weight (branch-major,
    # tap-minor column blocks), matching the kernel's slicing order.
    w_all = jnp.concatenate(
        [params['w_conv'][i][j]
         for i in range(n_branches) for j in range(KERNEL_SIZES[i])],
        axis=-1).astype(compute_dtype)                    # (D, n_taps*F)
    w_fc_t = params['w_fc'].T.astype(jnp.float32)         # (O, 3F)
    b_conv = params['b_conv'].astype(jnp.float32)         # (3, F)
    b_fc = params['b_fc'].astype(jnp.float32)             # (1, O)

    itemsize = np.dtype(compute_dtype).itemsize

    # --- batch tiling --------------------------------------------------------
    if batch_tile is None:
        batch_tile = B
        if B % 8 == 0:
            bt = 8
            while (bt * 2 <= B and B % (bt * 2) == 0
                   and 2 * (bt * 2) * T * D * itemsize <= (8 << 20)):
                bt *= 2
            batch_tile = bt
    if B % batch_tile != 0 or (batch_tile != B and batch_tile % 8 != 0):
        batch_tile = B
    grid = (B // batch_tile,)

    # --- VMEM budget (double-buffered tiles; sized with v7x's 64 MiB in mind) -
    emb_tile_bytes = batch_tile * T * D * itemsize
    p_bytes = batch_tile * T * max(n_taps * F, 128) * 4
    w_bytes = D * n_taps * F * itemsize + (n_branches * F + n_branches * F * O + O) * 4
    vmem_limit = 2 * emb_tile_bytes + 2 * w_bytes + 3 * p_bytes + (2 << 20)
    vmem_limit = int(min(48 << 20, max(16 << 20, vmem_limit)))

    const2 = lambda b: (0, 0)
    return pl.pallas_call(
        _sentiment_cnn_kernel,
        out_shape=jax.ShapeDtypeStruct((B, O), jnp.float32),
        grid=grid,
        in_specs=[
            pl.BlockSpec((batch_tile, T, D), lambda b: (b, 0, 0)),
            pl.BlockSpec((D, n_taps * F), const2),        # resident across grid steps
            pl.BlockSpec((n_branches, F), const2),
            pl.BlockSpec((O, n_branches * F), const2),
            pl.BlockSpec((1, O), const2),
        ],
        out_specs=pl.BlockSpec((batch_tile, O), lambda b: (b, 0)),
        compiler_params=pltpu.CompilerParams(
            dimension_semantics=("parallel",),
            vmem_limit_bytes=vmem_limit),
    )(embeds, w_all, b_conv, w_fc_t, b_fc)


def _reference(token_ids, params):
    """Pure-JAX reference of the PyTorch forward (eval mode), all f32."""
    embeds = jnp.take(params['emb_table'], token_ids, axis=0).astype(jnp.float32)
    B, T, _ = embeds.shape
    feats = []
    for i, k in enumerate(KERNEL_SIZES):
        w = params['w_conv'][i]                           # (k, D, F)
        t_out = T - k + 1
        s = jnp.zeros((B, t_out, w.shape[-1]), jnp.float32)
        for j in range(k):
            s = s + jnp.einsum('btd,df->btf', embeds[:, j:j + t_out, :], w[j])
        s = s + params['b_conv'][i]
        feats.append(jnp.max(jax.nn.relu(s), axis=1))
    feat = jnp.concatenate(feats, axis=-1)
    return jax.nn.sigmoid(feat @ params['w_fc'] + params['b_fc'])


if __name__ == "__main__":
    # small, deterministic shapes consistent with the module
    B, T, D = 16, 32, 64          # batch, seq_len, embedding_dim
    V = 97                        # vocab size
    O = 1                         # output_size (single sigmoid score)
    F = NUM_FILTERS

    key = jax.random.PRNGKey(0)
    k_emb, k_tok, k_fc, kb_fc, *k_convs = jax.random.split(key, 4 + len(KERNEL_SIZES))

    params = {
        'emb_table': 0.1 * jax.random.normal(k_emb, (V, D), dtype=jnp.float32),
        # conv weights stored as (k, D, F) (PyTorch (F,1,k,D) transposed to (k,D,F))
        'w_conv': [0.1 * jax.random.normal(kc, (k, D, F), dtype=jnp.float32)
                   for kc, k in zip(k_convs, KERNEL_SIZES)],
        'b_conv': 0.01 * jnp.arange(len(KERNEL_SIZES) * F,
                                    dtype=jnp.float32).reshape(len(KERNEL_SIZES), F),
        'w_fc': 0.1 * jax.random.normal(k_fc, (len(KERNEL_SIZES) * F, O),
                                        dtype=jnp.float32),
        'b_fc': 0.1 * jax.random.normal(kb_fc, (1, O), dtype=jnp.float32),
    }

    token_ids = jax.random.randint(k_tok, (B, T), 0, V, dtype=jnp.int32)

    ref = jax.block_until_ready(_reference(token_ids, params))

    # f32 path, batch tiled into a real grid (2 blocks of 8)
    out_f32 = jax.block_until_ready(
        sentiment_cnn_forward(token_ids, params, batch_tile=8,
                              compute_dtype=jnp.float32))
    assert out_f32.shape == (B, O)
    assert np.allclose(np.asarray(out_f32), np.asarray(ref), atol=1e-5, rtol=1e-5)

    # bf16 matmul inputs (f32 accumulate / f32 elementwise): halves HBM traffic
    out_bf16 = jax.block_until_ready(
        sentiment_cnn_forward(token_ids, params, compute_dtype=jnp.bfloat16))
    assert np.allclose(np.asarray(out_bf16), np.asarray(ref), atol=2e-2, rtol=2e-2)

    print("KERNEL_OK")
</pallas_src>

<mosaic_0001>
module attributes {stable_mosaic.version = 11 : i64} {
  func.func @_sentiment_cnn_kernel(%arg0: i32, %arg1: memref<8x32x64xf32, #tpu.memory_space<vmem>>, %arg2: memref<64x96xf32, #tpu.memory_space<vmem>>, %arg3: memref<3x8xf32, #tpu.memory_space<vmem>>, %arg4: memref<1x24xf32, #tpu.memory_space<vmem>>, %arg5: memref<1x1xf32, #tpu.memory_space<vmem>>, %arg6: memref<8x1xf32, #tpu.memory_space<vmem>>) attributes {dimension_semantics = [#tpu.dimension_semantics<parallel>], iteration_bounds = array<i64: 2>, scalar_prefetch = 0 : i64, scratch_operands = 0 : i64, tpu.core_type = #tpu.core_type<tc>, window_params = [{transform_indices = @transform_0, window_bounds = array<i64: 8, 32, 64>}, {pipeline_mode = #tpu.pipeline_mode<synchronous>, transform_indices = @transform_1, window_bounds = array<i64: 64, 96>}, {pipeline_mode = #tpu.pipeline_mode<synchronous>, transform_indices = @transform_2, window_bounds = array<i64: 3, 8>}, {pipeline_mode = #tpu.pipeline_mode<synchronous>, transform_indices = @transform_3, window_bounds = array<i64: 1, 24>}, {pipeline_mode = #tpu.pipeline_mode<synchronous>, transform_indices = @transform_4, window_bounds = array<i64: 1, 1>}, {transform_indices = @transform_5, window_bounds = array<i64: 8, 1>}]} {
    %c0 = arith.constant 0 : index
    %c0_0 = arith.constant 0 : index
    %c0_1 = arith.constant 0 : index
    %0 = vector.load %arg1[%c0, %c0_0, %c0_1] : memref<8x32x64xf32, #tpu.memory_space<vmem>>, vector<8x32x64xf32>
    %1 = vector.shape_cast %0 : vector<8x32x64xf32> to vector<256x64xf32>
    %c0_2 = arith.constant 0 : index
    %c0_3 = arith.constant 0 : index
    %2 = vector.load %arg2[%c0_2, %c0_3] : memref<64x96xf32, #tpu.memory_space<vmem>>, vector<64x96xf32>
    %cst = arith.constant dense<0.000000e+00> : vector<256x96xf32>
    %3 = tpu.matmul %1, %2, %cst {dimension_numbers = #tpu.dot_dimension_numbers<[1], [0], [0], [1], [0, 0, 1, 1], [], []>} : vector<256x64xf32>, vector<64x96xf32>, vector<256x96xf32> -> vector<256x96xf32>
    %4 = vector.shape_cast %3 : vector<256x96xf32> to vector<8x32x96xf32>
    %c0_4 = arith.constant 0 : index
    %c0_5 = arith.constant 0 : index
    %5 = vector.load %arg3[%c0_4, %c0_5] : memref<3x8xf32, #tpu.memory_space<vmem>>, vector<3x8xf32>
    %6 = vector.extract_strided_slice %4 {offsets = [0, 0, 0], sizes = [8, 30, 8], strides = [1, 1, 1]} : vector<8x32x96xf32> to vector<8x30x8xf32>
    %7 = vector.extract_strided_slice %4 {offsets = [0, 1, 8], sizes = [8, 30, 8], strides = [1, 1, 1]} : vector<8x32x96xf32> to vector<8x30x8xf32>
    %8 = arith.addf %6, %7 : vector<8x30x8xf32>
    %9 = vector.extract_strided_slice %4 {offsets = [0, 2, 16], sizes = [8, 30, 8], strides = [1, 1, 1]} : vector<8x32x96xf32> to vector<8x30x8xf32>
    %10 = arith.addf %8, %9 : vector<8x30x8xf32>
    %cst_6 = arith.constant dense<0xFF800000> : vector<8x8xf32>
    %11 = vector.multi_reduction <maximumf>, %10, %cst_6 [1] : vector<8x30x8xf32> to vector<8x8xf32>
    %12 = vector.extract_strided_slice %5 {offsets = [0, 0], sizes = [1, 8], strides = [1, 1]} : vector<3x8xf32> to vector<1x8xf32>
    %13 = vector.broadcast %12 : vector<1x8xf32> to vector<8x8xf32>
    %14 = arith.addf %11, %13 : vector<8x8xf32>
    %cst_7 = arith.constant 0.000000e+00 : f32
    %15 = vector.broadcast %cst_7 : f32 to vector<8x8xf32>
    %16 = arith.maximumf %14, %15 : vector<8x8xf32>
    %17 = vector.extract_strided_slice %4 {offsets = [0, 0, 24], sizes = [8, 29, 8], strides = [1, 1, 1]} : vector<8x32x96xf32> to vector<8x29x8xf32>
    %18 = vector.extract_strided_slice %4 {offsets = [0, 1, 32], sizes = [8, 29, 8], strides = [1, 1, 1]} : vector<8x32x96xf32> to vector<8x29x8xf32>
    %19 = arith.addf %17, %18 : vector<8x29x8xf32>
    %20 = vector.extract_strided_slice %4 {offsets = [0, 2, 40], sizes = [8, 29, 8], strides = [1, 1, 1]} : vector<8x32x96xf32> to vector<8x29x8xf32>
    %21 = arith.addf %19, %20 : vector<8x29x8xf32>
    %22 = vector.extract_strided_slice %4 {offsets = [0, 3, 48], sizes = [8, 29, 8], strides = [1, 1, 1]} : vector<8x32x96xf32> to vector<8x29x8xf32>
    %23 = arith.addf %21, %22 : vector<8x29x8xf32>
    %cst_8 = arith.constant dense<0xFF800000> : vector<8x8xf32>
    %24 = vector.multi_reduction <maximumf>, %23, %cst_8 [1] : vector<8x29x8xf32> to vector<8x8xf32>
    %25 = vector.extract_strided_slice %5 {offsets = [1, 0], sizes = [1, 8], strides = [1, 1]} : vector<3x8xf32> to vector<1x8xf32>
    %26 = vector.broadcast %25 : vector<1x8xf32> to vector<8x8xf32>
    %27 = arith.addf %24, %26 : vector<8x8xf32>
    %cst_9 = arith.constant 0.000000e+00 : f32
    %28 = vector.broadcast %cst_9 : f32 to vector<8x8xf32>
    %29 = arith.maximumf %27, %28 : vector<8x8xf32>
    %30 = vector.extract_strided_slice %4 {offsets = [0, 0, 56], sizes = [8, 28, 8], strides = [1, 1, 1]} : vector<8x32x96xf32> to vector<8x28x8xf32>
    %31 = vector.extract_strided_slice %4 {offsets = [0, 1, 64], sizes = [8, 28, 8], strides = [1, 1, 1]} : vector<8x32x96xf32> to vector<8x28x8xf32>
    %32 = arith.addf %30, %31 : vector<8x28x8xf32>
    %33 = vector.extract_strided_slice %4 {offsets = [0, 2, 72], sizes = [8, 28, 8], strides = [1, 1, 1]} : vector<8x32x96xf32> to vector<8x28x8xf32>
    %34 = arith.addf %32, %33 : vector<8x28x8xf32>
    %35 = vector.extract_strided_slice %4 {offsets = [0, 3, 80], sizes = [8, 28, 8], strides = [1, 1, 1]} : vector<8x32x96xf32> to vector<8x28x8xf32>
    %36 = arith.addf %34, %35 : vector<8x28x8xf32>
    %37 = vector.extract_strided_slice %4 {offsets = [0, 4, 88], sizes = [8, 28, 8], strides = [1, 1, 1]} : vector<8x32x96xf32> to vector<8x28x8xf32>
    %38 = arith.addf %36, %37 : vector<8x28x8xf32>
    %cst_10 = arith.constant dense<0xFF800000> : vector<8x8xf32>
    %39 = vector.multi_reduction <maximumf>, %38, %cst_10 [1] : vector<8x28x8xf32> to vector<8x8xf32>
    %40 = vector.extract_strided_slice %5 {offsets = [2, 0], sizes = [1, 8], strides = [1, 1]} : vector<3x8xf32> to vector<1x8xf32>
    %41 = vector.broadcast %40 : vector<1x8xf32> to vector<8x8xf32>
    %42 = arith.addf %39, %41 : vector<8x8xf32>
    %cst_11 = arith.constant 0.000000e+00 : f32
    %43 = vector.broadcast %cst_11 : f32 to vector<8x8xf32>
    %44 = arith.maximumf %42, %43 : vector<8x8xf32>
    %45 = tpu.concatenate %16, %29, %44 in 1 : vector<8x8xf32>, vector<8x8xf32>, vector<8x8xf32> -> vector<8x24xf32>
    %c0_12 = arith.constant 0 : index
    %c0_13 = arith.constant 0 : index
    %46 = vector.load %arg4[%c0_12, %c0_13] : memref<1x24xf32, #tpu.memory_space<vmem>>, vector<1x24xf32>
    %47 = vector.broadcast %46 : vector<1x24xf32> to vector<8x24xf32>
    %48 = arith.mulf %45, %47 : vector<8x24xf32>
    %cst_14 = arith.constant dense<0.000000e+00> : vector<8xf32>
    %49 = vector.multi_reduction <add>, %48, %cst_14 [1] : vector<8x24xf32> to vector<8xf32>
    %50 = vector.shape_cast %49 : vector<8xf32> to vector<8x1xf32>
    %c0_15 = arith.constant 0 : index
    %c0_16 = arith.constant 0 : index
    %51 = vector.load %arg5[%c0_15, %c0_16] : memref<1x1xf32, #tpu.memory_space<vmem>>, vector<1x1xf32>
    %52 = vector.broadcast %51 : vector<1x1xf32> to vector<8x1xf32>
    %53 = arith.addf %50, %52 : vector<8x1xf32>
    %54 = arith.negf %53 : vector<8x1xf32>
    %55 = math.exp %54 : vector<8x1xf32>
    %cst_17 = arith.constant 1.000000e+00 : f32
    %56 = vector.broadcast %cst_17 : f32 to vector<8x1xf32>
    %57 = arith.addf %56, %55 : vector<8x1xf32>
    %58 = arith.divf %56, %57 : vector<8x1xf32>
    %c0_18 = arith.constant 0 : index
    %c0_19 = arith.constant 0 : index
    %59 = vector.load %arg6[%c0_18, %c0_19] : memref<8x1xf32, #tpu.memory_space<vmem>>, vector<8x1xf32>
    tpu.vector_store %arg6[%c0_18, %c0_19], %58 {strides = array<i32>} : memref<8x1xf32, #tpu.memory_space<vmem>>, vector<8x1xf32>,
    return
  }
  func.func @transform_0(%arg0: i32) -> (i32, i32, i32) {
    %c0_i32 = arith.constant 0 : i32
    %c0_i32_0 = arith.constant 0 : i32
    %c0_i32_1 = arith.constant 0 : i32
    return %arg0, %c0_i32, %c0_i32_0 : i32, i32, i32
  }
  func.func @transform_1(%arg0: i32) -> (i32, i32) {
    %c0_i32 = arith.constant 0 : i32
    %c0_i32_0 = arith.constant 0 : i32
    %c0_i32_1 = arith.constant 0 : i32
    return %c0_i32, %c0_i32_0 : i32, i32
  }
  func.func @transform_2(%arg0: i32) -> (i32, i32) {
    %c0_i32 = arith.constant 0 : i32
    %c0_i32_0 = arith.constant 0 : i32
    %c0_i32_1 = arith.constant 0 : i32
    return %c0_i32, %c0_i32_0 : i32, i32
  }
  func.func @transform_3(%arg0: i32) -> (i32, i32) {
    %c0_i32 = arith.constant 0 : i32
    %c0_i32_0 = arith.constant 0 : i32
    %c0_i32_1 = arith.constant 0 : i32
    return %c0_i32, %c0_i32_0 : i32, i32
  }
  func.func @transform_4(%arg0: i32) -> (i32, i32) {
    %c0_i32 = arith.constant 0 : i32
    %c0_i32_0 = arith.constant 0 : i32
    %c0_i32_1 = arith.constant 0 : i32
    return %c0_i32, %c0_i32_0 : i32, i32
  }
  func.func @transform_5(%arg0: i32) -> (i32, i32) {
    %c0_i32 = arith.constant 0 : i32
    %c0_i32_0 = arith.constant 0 : i32
    return %arg0, %c0_i32 : i32, i32
  }
}

</mosaic_0001>

<llo_original>
// kernel: tpu_custom_call.1
$region0: #{tpu_custom_call.1}
  #allocation0 [shape = 'u32[]', space=smem, size = 0x4, offset = 0x4, fixed_abs, tag = 'smem constant byte address 0x4 - core index']
  #allocation1 [shape = 'u32[144,128]{1,0:T(1,128)}', space=vmem, size = 0x12000, scoped, tag = 'internal scratch']
  #allocation2 [shape = 'f32[1,1]{1,0:T(1,128)S(1)}', space=vmem, size = 0x200, scoped, tag = 'scoped memory for tpu_custom_call.1']
  %s0 = inlined_call_operand.hbm [shape: f32[16,32,64], index: 0, kind: input, shape index: {}]
  %s1 = inlined_call_operand.hbm [shape: f32[64,96], index: 1, kind: input, shape index: {}]
  %s2 = inlined_call_operand.vmem [shape: f32[3,8], index: 2, kind: input, shape index: {}]
  %s3 = inlined_call_operand.vmem [shape: f32[1,24], index: 3, kind: input, shape index: {}]
  %s4 = inlined_call_operand.<no memory space> [shape: f32[1,1], index: 4, kind: input, shape index: {}]
  %s5 = inlined_call_operand.vmem [shape: f32[16,1], index: 5, kind: output, shape index: {}]
  %s6 = sld [smem:[#allocation0]]
  $region61: #{tpu_custom_call.1} parent=0
    _
  %s8 = ssub.s32 1, %s6
  %s9 = scalar_select 0, %s8, %s6
  %v10 = vstv %s4
  %11 = vst [vmem:[#allocation2] sm:$0x1] %v10
  $region1: #{tpu_custom_call.1} parent=0
    #allocation3 [shape = 'u8[262144]{0}', space=vmem, size = 0x40000, scoped, tag = 'input window, operand 0']
    #allocation4 [shape = 's32[2]{0}', space=sflag, size = 0x8, scoped, tag = 'scoped memory for tpu_custom_call.1']
    #allocation5 [shape = 'u8[32768]{0}', space=vmem, size = 0x8000, scoped, tag = 'input window, operand 1, single buffered']
    #allocation6 [shape = 's32[1]{0}', space=sflag, size = 0x4, scoped, tag = 'scoped memory for tpu_custom_call.1']
    %12 = vsyncpa [#allocation4], 0
    %s13 = scalar_lea.sflag [#allocation4], 1
    %14 = vsyncpa %s13, 0
    %15 = vsyncpa [#allocation6], 0
    loop: start=0, step=1, limit=4
    $region2: #{tpu_custom_call.1} parent=1 // loop_pre_header
      _
    $region3: #{tpu_custom_call.1} parent=1 // loop_header
      %s17 = sphi 0, %s21
      %p18 = scmp.ge.s32.totalorder %s17, 4
      %s27 = sphi 0, %s29
      %s30 = sphi 0, %s27
      %s31 = sphi 0, %s30
      %s47 = sphi 0, %s31
      %s51 = sphi 0, %s51
      %s53 = sphi 0, %s51
      %s54 = sphi 0, %s53
      %s68 = sphi 0, %s54
      %s72 = sphi 0, %s72
      %s74 = sphi 0, %s72
      %s75 = sphi 0, %s74
      %s89 = sphi 0, %s75
      %s93 = sphi 0, %s93
      %s95 = sphi 0, %s93
      %s96 = sphi 0, %s95
      %s110 = sphi 0, %s96
      %s114 = sphi 0, %s114
      %s116 = sphi 0, %s114
      %s117 = sphi 0, %s116
      %s131 = sphi 0, %s117
      %s137 = sphi 0, %s139
      %s140 = sphi 0, %s137
      %s141 = sphi 0, %s140
      %s157 = sphi 0, %s141
    $region4: #{tpu_custom_call.1} parent=1 // loop_header_branch
      %20 = sbr.rel (%p18) target = $region8
    $region5: #{tpu_custom_call.1} parent=1 // loop_body
      %s22 = ssub.s32 %s17, 1
      %s23 = ssub.s32 %s17, 2
      %s24 = sadd.s32 %s17, 1
      %s25 = ssub.s32 %s17, %s24
      %p26 = scmp.eq.s32.totalorder %s25, 0
      %s28 = sadd.s32 %s27, 1
      %s29 = scalar_select %p26, %s27, %s28
      %p32 = pneg %p26
      %p33 = scmp.eq.s32.totalorder %s17, 1
      %p34 = por %p32, %p33
      %p35 = scmp.ne.s32.totalorder %s27, %s30
      %p36 = scmp.eq.s32.totalorder %s17, 0
      %p37 = por %p35, %p36
      %p38 = scmp.ne.s32.totalorder %s27, %s30
      %p39 = scmp.eq.s32.totalorder %s22, 1
      %p40 = por %p38, %p39
      %p41 = scmp.ne.s32.totalorder %s30, %s31
      %p42 = scmp.eq.s32.totalorder %s22, 0
      %p43 = por %p41, %p42
      %p44 = scmp.ne.s32.totalorder %s30, %s31
      %p45 = scmp.eq.s32.totalorder %s23, 1
      %p46 = por %p44, %p45
      %p48 = scmp.ne.s32.totalorder %s31, %s47
      %p49 = scmp.eq.s32.totalorder %s23, 0
      %p50 = por %p48, %p49
      %s52 = sadd.s32 %s51, 1
      %p55 = scmp.eq.s32.totalorder %s17, 1
      %p56 = scmp.ne.s32.totalorder %s51, %s53
      %p57 = scmp.eq.s32.totalorder %s17, 0
      %p58 = por %p56, %p57
      %p59 = scmp.ne.s32.totalorder %s51, %s53
      %p60 = scmp.eq.s32.totalorder %s22, 1
      %p61 = por %p59, %p60
      %p62 = scmp.ne.s32.totalorder %s53, %s54
      %p63 = scmp.eq.s32.totalorder %s22, 0
      %p64 = por %p62, %p63
      %p65 = scmp.ne.s32.totalorder %s53, %s54
      %p66 = scmp.eq.s32.totalorder %s23, 1
      %p67 = por %p65, %p66
      %p69 = scmp.ne.s32.totalorder %s54, %s68
      %p70 = scmp.eq.s32.totalorder %s23, 0
      %p71 = por %p69, %p70
      %s73 = sadd.s32 %s72, 1
      %p76 = scmp.eq.s32.totalorder %s17, 1
      %p77 = scmp.ne.s32.totalorder %s72, %s74
      %p78 = scmp.eq.s32.totalorder %s17, 0
      %p79 = por %p77, %p78
      %p80 = scmp.ne.s32.totalorder %s72, %s74
      %p81 = scmp.eq.s32.totalorder %s22, 1
      %p82 = por %p80, %p81
      %p83 = scmp.ne.s32.totalorder %s74, %s75
      %p84 = scmp.eq.s32.totalorder %s22, 0
      %p85 = por %p83, %p84
      %p86 = scmp.ne.s32.totalorder %s74, %s75
      %p87 = scmp.eq.s32.totalorder %s23, 1
      %p88 = por %p86, %p87
      %p90 = scmp.ne.s32.totalorder %s75, %s89
      %p91 = scmp.eq.s32.totalorder %s23, 0
      %p92 = por %p90, %p91
      %s94 = sadd.s32 %s93, 1
      %p97 = scmp.eq.s32.totalorder %s17, 1
      %p98 = scmp.ne.s32.totalorder %s93, %s95
      %p99 = scmp.eq.s32.totalorder %s17, 0
      %p100 = por %p98, %p99
      %p101 = scmp.ne.s32.totalorder %s93, %s95
      %p102 = scmp.eq.s32.totalorder %s22, 1
      %p103 = por %p101, %p102
      %p104 = scmp.ne.s32.totalorder %s95, %s96
      %p105 = scmp.eq.s32.totalorder %s22, 0
      %p106 = por %p104, %p105
      %p107 = scmp.ne.s32.totalorder %s95, %s96
      %p108 = scmp.eq.s32.totalorder %s23, 1
      %p109 = por %p107, %p108
      %p111 = scmp.ne.s32.totalorder %s96, %s110
      %p112 = scmp.eq.s32.totalorder %s23, 0
      %p113 = por %p111, %p112
      %s115 = sadd.s32 %s114, 1
      %p118 = scmp.eq.s32.totalorder %s17, 1
      %p119 = scmp.ne.s32.totalorder %s114, %s116
      %p120 = scmp.eq.s32.totalorder %s17, 0
      %p121 = por %p119, %p120
      %p122 = scmp.ne.s32.totalorder %s114, %s116
      %p123 = scmp.eq.s32.totalorder %s22, 1
      %p124 = por %p122, %p123
      %p125 = scmp.ne.s32.totalorder %s116, %s117
      %p126 = scmp.eq.s32.totalorder %s22, 0
      %p127 = por %p125, %p126
      %p128 = scmp.ne.s32.totalorder %s116, %s117
      %p129 = scmp.eq.s32.totalorder %s23, 1
      %p130 = por %p128, %p129
      %p132 = scmp.ne.s32.totalorder %s117, %s131
      %p133 = scmp.eq.s32.totalorder %s23, 0
      %p134 = por %p132, %p133
      %s135 = ssub.s32 %s17, %s24
      %p136 = scmp.eq.s32.totalorder %s135, 0
      %s138 = sadd.s32 %s137, 1
      %s139 = scalar_select %p136, %s137, %s138
      %p142 = pneg %p136
      %p143 = scmp.eq.s32.totalorder %s17, 1
      %p144 = por %p142, %p143
      %p145 = scmp.ne.s32.totalorder %s137, %s140
      %p146 = scmp.eq.s32.totalorder %s17, 0
      %p147 = por %p145, %p146
      %p148 = scmp.ne.s32.totalorder %s137, %s140
      %p149 = scmp.eq.s32.totalorder %s22, 1
      %p150 = por %p148, %p149
      %p151 = scmp.ne.s32.totalorder %s140, %s141
      %p152 = scmp.eq.s32.totalorder %s22, 0
      %p153 = por %p151, %p152
      %p154 = scmp.ne.s32.totalorder %s140, %s141
      %p155 = scmp.eq.s32.totalorder %s23, 1
      %p156 = por %p154, %p155
      %p158 = scmp.ne.s32.totalorder %s141, %s157
      %p159 = scmp.eq.s32.totalorder %s23, 0
      %p160 = por %p158, %p159
      %p161 = scmp.le.s32.totalorder 1, %s17
      %p162 = scmp.lt.s32.totalorder %s17, 3
      %p163 = pnand %p161, %p162
      %p164 = pneg %p163
      // Predicated region
      $region9: #{tpu_custom_call.1} parent=5 // pred_check
        _
      $region10: #{tpu_custom_call.1} parent=5 // pred_check_branch
        %166 = sbr.rel (%p163) target = $region12
      $region11: #{tpu_custom_call.1} parent=5 // pred_region
        %s167 = ssub.s32 %s17, 1
        // Predicated region
        $region13: #{tpu_custom_call.1} parent=11 // pred_check
          %p168 = pneg %p64
        $region14: #{tpu_custom_call.1} parent=11 // pred_check_branch
          %170 = sbr.rel (%p168) target = $region16
        $region15: #{tpu_custom_call.1} parent=11 // pred_region
          %s172 = ssub.s32 1024, 1024
          %173 = vsyncadd [#allocation6], %s172
          %s174 = sshll.u32 [#allocation5], 4
          %s175 = int_to_ptr.vmem [resolvable:$true] %s174
          %180 = dma.hbm_to_vmem [thread:$0]  %s1, 1024, %s175, [#allocation6], 128, 128, 8
        $region16: #{tpu_custom_call.1} parent=11 // pred_fallthru
          _
        // Predicated region
        $region17: #{tpu_custom_call.1} parent=11 // pred_check
          %p181 = pneg %p85
        $region18: #{tpu_custom_call.1} parent=11 // pred_check_branch
          %183 = sbr.rel (%p181) target = $region20
        $region19: #{tpu_custom_call.1} parent=11 // pred_region
          _
        $region20: #{tpu_custom_call.1} parent=11 // pred_fallthru
          _
        // Predicated region
        $region21: #{tpu_custom_call.1} parent=11 // pred_check
          %p184 = pneg %p106
        $region22: #{tpu_custom_call.1} parent=11 // pred_check_branch
          %186 = sbr.rel (%p184) target = $region24
        $region23: #{tpu_custom_call.1} parent=11 // pred_region
          _
        $region24: #{tpu_custom_call.1} parent=11 // pred_fallthru
          _
        // Predicated region
        $region25: #{tpu_custom_call.1} parent=11 // pred_check
          %p187 = pneg %p127
        $region26: #{tpu_custom_call.1} parent=11 // pred_check_branch
          %189 = sbr.rel (%p187) target = $region28
        $region27: #{tpu_custom_call.1} parent=11 // pred_region
          _
        $region28: #{tpu_custom_call.1} parent=11 // pred_fallthru
          _
      $region12: #{tpu_custom_call.1} parent=5 // pred_fallthru
        _
      %p190 = scmp.lt.s32.totalorder %s17, 2
      // Predicated region
      $region29: #{tpu_custom_call.1} parent=5 // pred_check
        %p191 = pneg %p190
      $region30: #{tpu_custom_call.1} parent=5 // pred_check_branch
        %193 = sbr.rel (%p191) target = $region32
      $region31: #{tpu_custom_call.1} parent=5 // pred_region
        // Predicated region
        $region33: #{tpu_custom_call.1} parent=31 // pred_check
          %p194 = pneg %p37
        $region34: #{tpu_custom_call.1} parent=31 // pred_check_branch
          %196 = sbr.rel (%p194) target = $region36
        $region35: #{tpu_custom_call.1} parent=31 // pred_region
          %s197 = sand.u32 %s27, 1
          %s198 = scalar_lea.sflag [#allocation4], %s197
          %s199 = sand.u32 %s27, 1
          %s200 = smul.addr %s199, 256
          %s201 = scalar_lea.vmem [#allocation3], %s200
          %s202 = smul.u32 8, %s17
          %s204 = ssub.s32 4096, 4096
          %205 = vsyncadd %s198, %s204
          %s206 = smul.addr %s202, 4
          %s207 = smul.addr %s206, 128
          %s208 = scalar_lea.hbm %s0, %s207
          %s209 = sshll.u32 %s201, 4
          %s210 = int_to_ptr.vmem [resolvable:$true] %s209
          %215 = dma.hbm_to_vmem [thread:$0]  %s208, 4096, %s210, %s198, 128, 128, 8
        $region36: #{tpu_custom_call.1} parent=31 // pred_fallthru
          _
      $region32: #{tpu_custom_call.1} parent=5 // pred_fallthru
        _
      %p216 = scmp.le.s32.totalorder 1, %s17
      %p217 = scmp.lt.s32.totalorder %s17, 3
      %p218 = pnand %p216, %p217
      %p219 = pneg %p218
      // Predicated region
      $region37: #{tpu_custom_call.1} parent=5 // pred_check
        _
      $region38: #{tpu_custom_call.1} parent=5 // pred_check_branch
        %221 = sbr.rel (%p218) target = $region40
      $region39: #{tpu_custom_call.1} parent=5 // pred_region
        %s222 = ssub.s32 %s17, 1
        %s223 = sand.u32 %s30, 1
        %s224 = scalar_lea.sflag [#allocation4], %s223
        %s225 = sand.u32 %s30, 1
        %s226 = smul.addr %s225, 256
        %s227 = scalar_lea.vmem [#allocation3], %s226
        // Predicated region
        $region41: #{tpu_custom_call.1} parent=39 // pred_check
          %p228 = pneg %p43
        $region42: #{tpu_custom_call.1} parent=39 // pred_check_branch
          %230 = sbr.rel (%p228) target = $region44
        $region43: #{tpu_custom_call.1} parent=39 // pred_region
          %231 = dma.done %s224, 4096
        $region44: #{tpu_custom_call.1} parent=39 // pred_fallthru
          _
        // Predicated region
        $region45: #{tpu_custom_call.1} parent=39 // pred_check
          %p232 = pneg %p64
        $region46: #{tpu_custom_call.1} parent=39 // pred_check_branch
          %234 = sbr.rel (%p232) target = $region48
        $region47: #{tpu_custom_call.1} parent=39 // pred_region
          %235 = dma.done [#allocation6], 1024
        $region48: #{tpu_custom_call.1} parent=39 // pred_fallthru
          _
        %s236 = sand.u32 %s30, 1
        %s237 = scalar_lea.sflag [#allocation4], %s236
        %s238 = sand.u32 %s30, 1
        %s239 = smul.addr %s238, 256
        %s240 = scalar_lea.vmem [#allocation3], %s239
        %p241 = pneg %p43
        %p242 = pneg %p40
        %p243 = pneg %p64
        %p244 = pneg %p61
        %p245 = pneg %p85
        %p246 = pneg %p82
        %p247 = pneg %p106
        %p248 = pneg %p103
        %p249 = pneg %p127
        %p250 = pneg %p124
        %p251 = pneg %p153
        %p252 = pneg %p150
        %p253 = scmp.lt.s32.totalorder %s22, 1
        %s254 = scalar_select %p253, %s22, 1
        %s255 = smul.addr %s254, 8
        %s256 = scalar_lea.vmem %s5, %s255
        %s257 = smul.u32 8, %s22
        %p258 = scmp.lt.s32.totalorder %s22, 1
        %s259 = scalar_select %p258, %s22, 1
        %s260 = smul.addr %s259, 8
        %s261 = scalar_lea.vmem %s5, %s260
        %v262 = vld [vmem:[%s227] sm:$0xff]
        %v263 = vld [vmem:[%s227 + $0x8] sm:$0xff]
        %v264 = vld [vmem:[%s227 + $0x10] sm:$0xff]
        %v265 = vld [vmem:[%s227 + $0x18] sm:$0xff]
        %v266 = vld [vmem:[%s227 + $0x20] sm:$0xff]
        %v267 = vld [vmem:[%s227 + $0x28] sm:$0xff]
        %v268 = vld [vmem:[%s227 + $0x30] sm:$0xff]
        %v269 = vld [vmem:[%s227 + $0x38] sm:$0xff]
        %v270 = vld [vmem:[%s227 + $0x40] sm:$0xff]
        %v271 = vld [vmem:[%s227 + $0x48] sm:$0xff]
        %v272 = vld [vmem:[%s227 + $0x50] sm:$0xff]
        %v273 = vld [vmem:[%s227 + $0x58] sm:$0xff]
        %v274 = vld [vmem:[%s227 + $0x60] sm:$0xff]
        %v275 = vld [vmem:[%s227 + $0x68] sm:$0xff]
        %v276 = vld [vmem:[%s227 + $0x70] sm:$0xff]
        %v277 = vld [vmem:[%s227 + $0x78] sm:$0xff]
        %v278 = vld [vmem:[%s227 + $0x80] sm:$0xff]
        %v279 = vld [vmem:[%s227 + $0x88] sm:$0xff]
        %v280 = vld [vmem:[%s227 + $0x90] sm:$0xff]
        %v281 = vld [vmem:[%s227 + $0x98] sm:$0xff]
        %v282 = vld [vmem:[%s227 + $0xa0] sm:$0xff]
        %v283 = vld [vmem:[%s227 + $0xa8] sm:$0xff]
        %v284 = vld [vmem:[%s227 + $0xb0] sm:$0xff]
        %v285 = vld [vmem:[%s227 + $0xb8] sm:$0xff]
        %v286 = vld [vmem:[%s227 + $0xc0] sm:$0xff]
        %v287 = vld [vmem:[%s227 + $0xc8] sm:$0xff]
        %v288 = vld [vmem:[%s227 + $0xd0] sm:$0xff]
        %v289 = vld [vmem:[%s227 + $0xd8] sm:$0xff]
        %v290 = vld [vmem:[%s227 + $0xe0] sm:$0xff]
        %v291 = vld [vmem:[%s227 + $0xe8] sm:$0xff]
        %v292 = vld [vmem:[%s227 + $0xf0] sm:$0xff]
        %v293 = vld [vmem:[%s227 + $0xf8] sm:$0xff]
        %v294 = vld [vmem:[#allocation5] sm:$0xff]
        %v295 = vld [vmem:[#allocation5 + $0x8] sm:$0xff]
        %v296 = vld [vmem:[#allocation5 + $0x10] sm:$0xff]
        %v297 = vld [vmem:[#allocation5 + $0x18] sm:$0xff]
        %v298 = vld [vmem:[#allocation5 + $0x20] sm:$0xff]
        %v299 = vld [vmem:[#allocation5 + $0x28] sm:$0xff]
        %v300 = vld [vmem:[#allocation5 + $0x30] sm:$0xff]
        %v301 = vld [vmem:[#allocation5 + $0x38] sm:$0xff]
        %vm302 = vcmask 523264
        %v304 = vsel %vm302, %v262, 0
        %v307 = vsel %vm302, %v263, 0
        %v310 = vsel %vm302, %v264, 0
        %v313 = vsel %vm302, %v265, 0
        %v316 = vsel %vm302, %v266, 0
        %v319 = vsel %vm302, %v267, 0
        %v322 = vsel %vm302, %v268, 0
        %v325 = vsel %vm302, %v269, 0
        %v328 = vsel %vm302, %v270, 0
        %v331 = vsel %vm302, %v271, 0
        %v334 = vsel %vm302, %v272, 0
        %v337 = vsel %vm302, %v273, 0
        %v340 = vsel %vm302, %v274, 0
        %v343 = vsel %vm302, %v275, 0
        %v346 = vsel %vm302, %v276, 0
        %v349 = vsel %vm302, %v277, 0
        %v352 = vsel %vm302, %v278, 0
        %v355 = vsel %vm302, %v279, 0
        %v358 = vsel %vm302, %v280, 0
        %v361 = vsel %vm302, %v281, 0
        %v364 = vsel %vm302, %v282, 0
        %v367 = vsel %vm302, %v283, 0
        %v370 = vsel %vm302, %v284, 0
        %v373 = vsel %vm302, %v285, 0
        %v376 = vsel %vm302, %v286, 0
        %v379 = vsel %vm302, %v287, 0
        %v382 = vsel %vm302, %v288, 0
        %v385 = vsel %vm302, %v289, 0
        %v388 = vsel %vm302, %v290, 0
        %v391 = vsel %vm302, %v291, 0
        %v394 = vsel %vm302, %v292, 0
        %v397 = vsel %vm302, %v293, 0
        %399 = vmatprep.subr.mxu0 0.0
        %400 = vmatpush1.msra.mxu0 0.0
        %401 = vmatprep.subr.mxu0 0.0
        %402 = vmatpush1.msra.mxu0 0.0
        %403 = vmatprep.subr.mxu0 0.0
        %404 = vmatpush1.msra.mxu0 0.0
        %405 = vmatprep.subr.mxu0 0.0
        %406 = vmatpush1.msra.mxu0 0.0
        %407 = vmatprep.subr.mxu0 0.0
        %408 = vmatpush1.msra.mxu0 0.0
        %409 = vmatprep.subr.mxu0 0.0
        %410 = vmatpush1.msra.mxu0 0.0
        %411 = vmatprep.subr.mxu0 0.0
        %412 = vmatpush1.msra.mxu0 0.0
        %413 = vmatprep.subr.mxu0 0.0
        %414 = vmatpush1.msra.mxu0 0.0
        %415 = vmatprep.subr.mxu0 0.0
        %416 = vmatpush1.msra.mxu0 %v301
        %417 = vmatprep.subr.mxu0 0.0
        %418 = vmatpush1.msra.mxu0 %v300
        %419 = vmatprep.subr.mxu0 0.0
        %420 = vmatpush1.msra.mxu0 %v299
        %421 = vmatprep.subr.mxu0 0.0
        %422 = vmatpush1.msra.mxu0 %v298
        %423 = vmatprep.subr.mxu0 0.0
        %424 = vmatpush1.msra.mxu0 %v297
        %425 = vmatprep.subr.mxu0 0.0
        %426 = vmatpush1.msra.mxu0 %v296
        %427 = vmatprep.subr.mxu0 0.0
        %428 = vmatpush1.msra.mxu0 %v295
        %429 = vmatprep.subr.mxu0 0.0
        %430 = vmatpush1.msra.mxu0 %v294
        %431 = vmatprep.subr.mxu0 0.0
        %432 = vmatpush2.msra.mxu0 0.0
        %433 = vmatprep.subr.mxu0 0.0
        %434 = vmatpush2.msra.mxu0 0.0
        %435 = vmatprep.subr.mxu0 0.0
        %436 = vmatpush2.msra.mxu0 0.0
        %437 = vmatprep.subr.mxu0 0.0
        %438 = vmatpush2.msra.mxu0 0.0
        %439 = vmatprep.subr.mxu0 0.0
        %440 = vmatpush2.msra.mxu0 0.0
        %441 = vmatprep.subr.mxu0 0.0
        %442 = vmatpush2.msra.mxu0 0.0
        %443 = vmatprep.subr.mxu0 0.0
        %444 = vmatpush2.msra.mxu0 0.0
        %445 = vmatprep.subr.mxu0 0.0
        %446 = vmatpush2.msra.mxu0 0.0
        %447 = vmatprep.subr.mxu0 0.0
        %448 = vmatpush2.msra.mxu0 0.0
        %449 = vmatprep.subr.mxu0 0.0
        %450 = vmatpush2.msra.mxu0 0.0
        %451 = vmatprep.subr.mxu0 0.0
        %452 = vmatpush2.msra.mxu0 0.0
        %453 = vmatprep.subr.mxu0 0.0
        %454 = vmatpush2.msra.mxu0 0.0
        %455 = vmatprep.subr.mxu0 0.0
        %456 = vmatpush2.msra.mxu0 0.0
        %457 = vmatprep.subr.mxu0 0.0
        %458 = vmatpush2.msra.mxu0 0.0
        %459 = vmatprep.subr.mxu0 0.0
        %460 = vmatpush2.msra.mxu0 0.0
        %461 = vmatprep.subr.mxu0 0.0
        %462 = vmatpush2.msra.mxu0 0.0
        %463 = vmatprep.mubr.f32.mxu0 0.0
        %464 = vmatmul.mubr.f32.gmra.mxu0 %v304
        %v465 = vpop.f32.mrf.mxu0
        %v466 = vadd.f32 0.0, %v465
        %v467 = vpop.f32.mrf.mxu0
        %468 = vmatprep.mubr.f32.mxu0 0.0
        %469 = vmatmul.mubr.f32.gmra.mxu0 %v307
        %v470 = vpop.f32.mrf.mxu0
        %v471 = vadd.f32 0.0, %v470
        %v472 = vpop.f32.mrf.mxu0
        %473 = vmatprep.mubr.f32.mxu0 0.0
        %474 = vmatmul.mubr.f32.gmra.mxu0 %v310
        %v475 = vpop.f32.mrf.mxu0
        %v476 = vadd.f32 0.0, %v475
        %v477 = vpop.f32.mrf.mxu0
        %478 = vmatprep.mubr.f32.mxu0 0.0
        %479 = vmatmul.mubr.f32.gmra.mxu0 %v313
        %v480 = vpop.f32.mrf.mxu0
        %v481 = vadd.f32 0.0, %v480
        %v482 = vpop.f32.mrf.mxu0
        %483 = vmatprep.mubr.f32.mxu0 0.0
        %484 = vmatmul.mubr.f32.gmra.mxu0 %v316
        %v485 = vpop.f32.mrf.mxu0
        %v486 = vadd.f32 0.0, %v485
        %v487 = vpop.f32.mrf.mxu0
        %488 = vmatprep.mubr.f32.mxu0 0.0
        %489 = vmatmul.mubr.f32.gmra.mxu0 %v319
        %v490 = vpop.f32.mrf.mxu0
        %v491 = vadd.f32 0.0, %v490
        %v492 = vpop.f32.mrf.mxu0
        %493 = vmatprep.mubr.f32.mxu0 0.0
        %494 = vmatmul.mubr.f32.gmra.mxu0 %v322
        %v495 = vpop.f32.mrf.mxu0
        %v496 = vadd.f32 0.0, %v495
        %v497 = vpop.f32.mrf.mxu0
        %498 = vmatprep.mubr.f32.mxu0 0.0
        %499 = vmatmul.mubr.f32.gmra.mxu0 %v325
        %v500 = vpop.f32.mrf.mxu0
        %v501 = vadd.f32 0.0, %v500
        %v502 = vpop.f32.mrf.mxu0
        %503 = vmatprep.mubr.f32.mxu0 0.0
        %504 = vmatmul.mubr.f32.gmra.mxu0 %v328
        %v505 = vpop.f32.mrf.mxu0
        %v506 = vadd.f32 0.0, %v505
        %v507 = vpop.f32.mrf.mxu0
        %508 = vmatprep.mubr.f32.mxu0 0.0
        %509 = vmatmul.mubr.f32.gmra.mxu0 %v331
        %v510 = vpop.f32.mrf.mxu0
        %v511 = vadd.f32 0.0, %v510
        %v512 = vpop.f32.mrf.mxu0
        %513 = vmatprep.mubr.f32.mxu0 0.0
        %514 = vmatmul.mubr.f32.gmra.mxu0 %v334
        %v515 = vpop.f32.mrf.mxu0
        %v516 = vadd.f32 0.0, %v515
        %v517 = vpop.f32.mrf.mxu0
        %518 = vmatprep.mubr.f32.mxu0 0.0
        %519 = vmatmul.mubr.f32.gmra.mxu0 %v337
        %v520 = vpop.f32.mrf.mxu0
        %v521 = vadd.f32 0.0, %v520
        %v522 = vpop.f32.mrf.mxu0
        %523 = vmatprep.mubr.f32.mxu0 0.0
        %524 = vmatmul.mubr.f32.gmra.mxu0 %v340
        %v525 = vpop.f32.mrf.mxu0
        %v526 = vadd.f32 0.0, %v525
        %v527 = vpop.f32.mrf.mxu0
        %528 = vmatprep.mubr.f32.mxu0 0.0
        %529 = vmatmul.mubr.f32.gmra.mxu0 %v343
        %v530 = vpop.f32.mrf.mxu0
        %v531 = vadd.f32 0.0, %v530
        %v532 = vpop.f32.mrf.mxu0
        %533 = vmatprep.mubr.f32.mxu0 0.0
        %534 = vmatmul.mubr.f32.gmra.mxu0 %v346
        %v535 = vpop.f32.mrf.mxu0
        %v536 = vadd.f32 0.0, %v535
        %v537 = vpop.f32.mrf.mxu0
        %538 = vmatprep.mubr.f32.mxu0 0.0
        %539 = vmatmul.mubr.f32.gmra.mxu0 %v349
        %v540 = vpop.f32.mrf.mxu0
        %v541 = vadd.f32 0.0, %v540
        %v542 = vpop.f32.mrf.mxu0
        %543 = vmatprep.mubr.f32.mxu0 0.0
        %544 = vmatmul.mubr.f32.gmra.mxu0 %v352
        %v545 = vpop.f32.mrf.mxu0
        %v546 = vadd.f32 0.0, %v545
        %v547 = vpop.f32.mrf.mxu0
        %548 = vmatprep.mubr.f32.mxu0 0.0
        %549 = vmatmul.mubr.f32.gmra.mxu0 %v355
        %v550 = vpop.f32.mrf.mxu0
        %v551 = vadd.f32 0.0, %v550
        %v552 = vpop.f32.mrf.mxu0
        %553 = vmatprep.mubr.f32.mxu0 0.0
        %554 = vmatmul.mubr.f32.gmra.mxu0 %v358
        %v555 = vpop.f32.mrf.mxu0
        %v556 = vadd.f32 0.0, %v555
        %v557 = vpop.f32.mrf.mxu0
        %558 = vmatprep.mubr.f32.mxu0 0.0
        %559 = vmatmul.mubr.f32.gmra.mxu0 %v361
        %v560 = vpop.f32.mrf.mxu0
        %v561 = vadd.f32 0.0, %v560
        %v562 = vpop.f32.mrf.mxu0
        %563 = vmatprep.mubr.f32.mxu0 0.0
        %564 = vmatmul.mubr.f32.gmra.mxu0 %v364
        %v565 = vpop.f32.mrf.mxu0
        %v566 = vadd.f32 0.0, %v565
        %v567 = vpop.f32.mrf.mxu0
        %568 = vmatprep.mubr.f32.mxu0 0.0
        %569 = vmatmul.mubr.f32.gmra.mxu0 %v367
        %v570 = vpop.f32.mrf.mxu0
        %v571 = vadd.f32 0.0, %v570
        %v572 = vpop.f32.mrf.mxu0
        %573 = vmatprep.mubr.f32.mxu0 0.0
        %574 = vmatmul.mubr.f32.gmra.mxu0 %v370
        %v575 = vpop.f32.mrf.mxu0
        %v576 = vadd.f32 0.0, %v575
        %v577 = vpop.f32.mrf.mxu0
        %578 = vmatprep.mubr.f32.mxu0 0.0
        %579 = vmatmul.mubr.f32.gmra.mxu0 %v373
        %v580 = vpop.f32.mrf.mxu0
        %v581 = vadd.f32 0.0, %v580
        %v582 = vpop.f32.mrf.mxu0
        %583 = vmatprep.mubr.f32.mxu0 0.0
        %584 = vmatmul.mubr.f32.gmra.mxu0 %v376
        %v585 = vpop.f32.mrf.mxu0
        %v586 = vadd.f32 0.0, %v585
        %v587 = vpop.f32.mrf.mxu0
        %588 = vmatprep.mubr.f32.mxu0 0.0
        %589 = vmatmul.mubr.f32.gmra.mxu0 %v379
        %v590 = vpop.f32.mrf.mxu0
        %v591 = vadd.f32 0.0, %v590
        %v592 = vpop.f32.mrf.mxu0
        %593 = vmatprep.mubr.f32.mxu0 0.0
        %594 = vmatmul.mubr.f32.gmra.mxu0 %v382
        %v595 = vpop.f32.mrf.mxu0
        %v596 = vadd.f32 0.0, %v595
        %v597 = vpop.f32.mrf.mxu0
        %598 = vmatprep.mubr.f32.mxu0 0.0
        %599 = vmatmul.mubr.f32.gmra.mxu0 %v385
        %v600 = vpop.f32.mrf.mxu0
        %v601 = vadd.f32 0.0, %v600
        %v602 = vpop.f32.mrf.mxu0
        %603 = vmatprep.mubr.f32.mxu0 0.0
        %604 = vmatmul.mubr.f32.gmra.mxu0 %v388
        %v605 = vpop.f32.mrf.mxu0
        %v606 = vadd.f32 0.0, %v605
        %v607 = vpop.f32.mrf.mxu0
        %608 = vmatprep.mubr.f32.mxu0 0.0
        %609 = vmatmul.mubr.f32.gmra.mxu0 %v391
        %v610 = vpop.f32.mrf.mxu0
        %v611 = vadd.f32 0.0, %v610
        %v612 = vpop.f32.mrf.mxu0
        %613 = vmatprep.mubr.f32.mxu0 0.0
        %614 = vmatmul.mubr.f32.gmra.mxu0 %v394
        %v615 = vpop.f32.mrf.mxu0
        %v616 = vadd.f32 0.0, %v615
        %v617 = vpop.f32.mrf.mxu0
        %618 = vmatprep.mubr.f32.mxu0 0.0
        %619 = vmatmul.mubr.f32.gmra.mxu0 %v397
        %v620 = vpop.f32.mrf.mxu0
        %v621 = vadd.f32 0.0, %v620
        %v622 = vpop.f32.mrf.mxu0
        %623 = vdwg.mxu0
        %v624 = vld [vmem:[%s2] sm:$0x7]
        %vm657 = vcmask 1046528
        %v658 = vrot.slane %v466, 1
        %v659 = vrot.slane %v471, 1
        %v660 = vsel %vm657, %v658, %v659
        %v661 = vrot.slane %v476, 1
        %v662 = vsel %vm657, %v659, %v661
        %v663 = vrot.slane %v481, 1
        %v664 = vsel %vm657, %v661, %v663
        %v665 = vrot.slane %v486, 1
        %v666 = vrot.slane %v491, 1
        %v667 = vsel %vm657, %v665, %v666
        %v668 = vrot.slane %v496, 1
        %v669 = vsel %vm657, %v666, %v668
        %v670 = vrot.slane %v501, 1
        %v671 = vsel %vm657, %v668, %v670
        %v672 = vrot.slane %v506, 1
        %v673 = vrot.slane %v511, 1
        %v674 = vsel %vm657, %v672, %v673
        %v675 = vrot.slane %v516, 1
        %v676 = vsel %vm657, %v673, %v675
        %v677 = vrot.slane %v521, 1
        %v678 = vsel %vm657, %v675, %v677
        %v679 = vrot.slane %v526, 1
        %v680 = vrot.slane %v531, 1
        %v681 = vsel %vm657, %v679, %v680
        %v682 = vrot.slane %v536, 1
        %v683 = vsel %vm657, %v680, %v682
        %v684 = vrot.slane %v541, 1
        %v685 = vsel %vm657, %v682, %v684
        %v686 = vrot.slane %v546, 1
        %v687 = vrot.slane %v551, 1
        %v688 = vsel %vm657, %v686, %v687
        %v689 = vrot.slane %v556, 1
        %v690 = vsel %vm657, %v687, %v689
        %v691 = vrot.slane %v561, 1
        %v692 = vsel %vm657, %v689, %v691
        %v693 = vrot.slane %v566, 1
        %v694 = vrot.slane %v571, 1
        %v695 = vsel %vm657, %v693, %v694
        %v696 = vrot.slane %v576, 1
        %v697 = vsel %vm657, %v694, %v696
        %v698 = vrot.slane %v581, 1
        %v699 = vsel %vm657, %v696, %v698
        %v700 = vrot.slane %v586, 1
        %v701 = vrot.slane %v591, 1
        %v702 = vsel %vm657, %v700, %v701
        %v703 = vrot.slane %v596, 1
        %v704 = vsel %vm657, %v701, %v703
        %v705 = vrot.slane %v601, 1
        %v706 = vsel %vm657, %v703, %v705
        %v707 = vrot.slane %v606, 1
        %v708 = vrot.slane %v611, 1
        %v709 = vsel %vm657, %v707, %v708
        %v710 = vrot.slane %v616, 1
        %v711 = vsel %vm657, %v708, %v710
        %v712 = vrot.slane %v621, 1
        %v713 = vsel %vm657, %v710, %v712
        %714 = vrot.lane.b32.xlu0 %v660, 120
        %v715 = vpop.permute.xlu0 %714
        %716 = vrot.lane.b32.xlu0 %v662, 120
        %v717 = vpop.permute.xlu0 %716
        %718 = vrot.lane.b32.xlu0 %v664, 120
        %v719 = vpop.permute.xlu0 %718
        %720 = vrot.lane.b32.xlu0 %v663, 120
        %v721 = vpop.permute.xlu0 %720
        %722 = vrot.lane.b32.xlu0 %v667, 120
        %v723 = vpop.permute.xlu0 %722
        %724 = vrot.lane.b32.xlu0 %v669, 120
        %v725 = vpop.permute.xlu0 %724
        %726 = vrot.lane.b32.xlu0 %v671, 120
        %v727 = vpop.permute.xlu0 %726
        %728 = vrot.lane.b32.xlu0 %v670, 120
        %v729 = vpop.permute.xlu0 %728
        %730 = vrot.lane.b32.xlu0 %v674, 120
        %v731 = vpop.permute.xlu0 %730
        %732 = vrot.lane.b32.xlu0 %v676, 120
        %v733 = vpop.permute.xlu0 %732
        %734 = vrot.lane.b32.xlu0 %v678, 120
        %v735 = vpop.permute.xlu0 %734
        %736 = vrot.lane.b32.xlu0 %v677, 120
        %v737 = vpop.permute.xlu0 %736
        %738 = vrot.lane.b32.xlu0 %v681, 120
        %v739 = vpop.permute.xlu0 %738
        %740 = vrot.lane.b32.xlu0 %v683, 120
        %v741 = vpop.permute.xlu0 %740
        %742 = vrot.lane.b32.xlu0 %v685, 120
        %v743 = vpop.permute.xlu0 %742
        %744 = vrot.lane.b32.xlu0 %v684, 120
        %v745 = vpop.permute.xlu0 %744
        %746 = vrot.lane.b32.xlu0 %v688, 120
        %v747 = vpop.permute.xlu0 %746
        %748 = vrot.lane.b32.xlu0 %v690, 120
        %v749 = vpop.permute.xlu0 %748
        %750 = vrot.lane.b32.xlu0 %v692, 120
        %v751 = vpop.permute.xlu0 %750
        %752 = vrot.lane.b32.xlu0 %v691, 120
        %v753 = vpop.permute.xlu0 %752
        %754 = vrot.lane.b32.xlu0 %v695, 120
        %v755 = vpop.permute.xlu0 %754
        %756 = vrot.lane.b32.xlu0 %v697, 120
        %v757 = vpop.permute.xlu0 %756
        %758 = vrot.lane.b32.xlu0 %v699, 120
        %v759 = vpop.permute.xlu0 %758
        %760 = vrot.lane.b32.xlu0 %v698, 120
        %v761 = vpop.permute.xlu0 %760
        %762 = vrot.lane.b32.xlu0 %v702, 120
        %v763 = vpop.permute.xlu0 %762
        %764 = vrot.lane.b32.xlu0 %v704, 120
        %v765 = vpop.permute.xlu0 %764
        %766 = vrot.lane.b32.xlu0 %v706, 120
        %v767 = vpop.permute.xlu0 %766
        %768 = vrot.lane.b32.xlu0 %v705, 120
        %v769 = vpop.permute.xlu0 %768
        %770 = vrot.lane.b32.xlu0 %v709, 120
        %v771 = vpop.permute.xlu0 %770
        %772 = vrot.lane.b32.xlu0 %v711, 120
        %v773 = vpop.permute.xlu0 %772
        %774 = vrot.lane.b32.xlu0 %v713, 120
        %v775 = vpop.permute.xlu0 %774
        %776 = vrot.lane.b32.xlu0 %v712, 120
        %v777 = vpop.permute.xlu0 %776
        %v810 = vadd.f32 %v466, %v715
        %v811 = vadd.f32 %v471, %v717
        %v812 = vadd.f32 %v476, %v719
        %v813 = vadd.f32 %v481, %v721
        %v814 = vadd.f32 %v486, %v723
        %v815 = vadd.f32 %v491, %v725
        %v816 = vadd.f32 %v496, %v727
        %v817 = vadd.f32 %v501, %v729
        %v818 = vadd.f32 %v506, %v731
        %v819 = vadd.f32 %v511, %v733
        %v820 = vadd.f32 %v516, %v735
        %v821 = vadd.f32 %v521, %v737
        %v822 = vadd.f32 %v526, %v739
        %v823 = vadd.f32 %v531, %v741
        %v824 = vadd.f32 %v536, %v743
        %v825 = vadd.f32 %v541, %v745
        %v826 = vadd.f32 %v546, %v747
        %v827 = vadd.f32 %v551, %v749
        %v828 = vadd.f32 %v556, %v751
        %v829 = vadd.f32 %v561, %v753
        %v830 = vadd.f32 %v566, %v755
        %v831 = vadd.f32 %v571, %v757
        %v832 = vadd.f32 %v576, %v759
        %v833 = vadd.f32 %v581, %v761
        %v834 = vadd.f32 %v586, %v763
        %v835 = vadd.f32 %v591, %v765
        %v836 = vadd.f32 %v596, %v767
        %v837 = vadd.f32 %v601, %v769
        %v838 = vadd.f32 %v606, %v771
        %v839 = vadd.f32 %v611, %v773
        %v840 = vadd.f32 %v616, %v775
        %v841 = vadd.f32 %v621, %v777
        %vm842 = vcmask 1045504
        %v843 = vrot.slane %v466, 2
        %v844 = vrot.slane %v471, 2
        %v845 = vsel %vm842, %v843, %v844
        %v846 = vrot.slane %v476, 2
        %v847 = vsel %vm842, %v844, %v846
        %v848 = vrot.slane %v481, 2
        %v849 = vsel %vm842, %v846, %v848
        %v850 = vrot.slane %v486, 2
        %v851 = vrot.slane %v491, 2
        %v852 = vsel %vm842, %v850, %v851
        %v853 = vrot.slane %v496, 2
        %v854 = vsel %vm842, %v851, %v853
        %v855 = vrot.slane %v501, 2
        %v856 = vsel %vm842, %v853, %v855
        %v857 = vrot.slane %v506, 2
        %v858 = vrot.slane %v511, 2
        %v859 = vsel %vm842, %v857, %v858
        %v860 = vrot.slane %v516, 2
        %v861 = vsel %vm842, %v858, %v860
        %v862 = vrot.slane %v521, 2
        %v863 = vsel %vm842, %v860, %v862
        %v864 = vrot.slane %v526, 2
        %v865 = vrot.slane %v531, 2
        %v866 = vsel %vm842, %v864, %v865
        %v867 = vrot.slane %v536, 2
        %v868 = vsel %vm842, %v865, %v867
        %v869 = vrot.slane %v541, 2
        %v870 = vsel %vm842, %v867, %v869
        %v871 = vrot.slane %v546, 2
        %v872 = vrot.slane %v551, 2
        %v873 = vsel %vm842, %v871, %v872
        %v874 = vrot.slane %v556, 2
        %v875 = vsel %vm842, %v872, %v874
        %v876 = vrot.slane %v561, 2
        %v877 = vsel %vm842, %v874, %v876
        %v878 = vrot.slane %v566, 2
        %v879 = vrot.slane %v571, 2
        %v880 = vsel %vm842, %v878, %v879
        %v881 = vrot.slane %v576, 2
        %v882 = vsel %vm842, %v879, %v881
        %v883 = vrot.slane %v581, 2
        %v884 = vsel %vm842, %v881, %v883
        %v885 = vrot.slane %v586, 2
        %v886 = vrot.slane %v591, 2
        %v887 = vsel %vm842, %v885, %v886
        %v888 = vrot.slane %v596, 2
        %v889 = vsel %vm842, %v886, %v888
        %v890 = vrot.slane %v601, 2
        %v891 = vsel %vm842, %v888, %v890
        %v892 = vrot.slane %v606, 2
        %v893 = vrot.slane %v611, 2
        %v894 = vsel %vm842, %v892, %v893
        %v895 = vrot.slane %v616, 2
        %v896 = vsel %vm842, %v893, %v895
        %v897 = vrot.slane %v621, 2
        %v898 = vsel %vm842, %v895, %v897
        %899 = vrot.lane.b32.xlu0 %v845, 112
        %v900 = vpop.permute.xlu0 %899
        %901 = vrot.lane.b32.xlu0 %v847, 112
        %v902 = vpop.permute.xlu0 %901
        %903 = vrot.lane.b32.xlu0 %v849, 112
        %v904 = vpop.permute.xlu0 %903
        %905 = vrot.lane.b32.xlu0 %v848, 112
        %v906 = vpop.permute.xlu0 %905
        %907 = vrot.lane.b32.xlu0 %v852, 112
        %v908 = vpop.permute.xlu0 %907
        %909 = vrot.lane.b32.xlu0 %v854, 112
        %v910 = vpop.permute.xlu0 %909
        %911 = vrot.lane.b32.xlu0 %v856, 112
        %v912 = vpop.permute.xlu0 %911
        %913 = vrot.lane.b32.xlu0 %v855, 112
        %v914 = vpop.permute.xlu0 %913
        %915 = vrot.lane.b32.xlu0 %v859, 112
        %v916 = vpop.permute.xlu0 %915
        %917 = vrot.lane.b32.xlu0 %v861, 112
        %v918 = vpop.permute.xlu0 %917
        %919 = vrot.lane.b32.xlu0 %v863, 112
        %v920 = vpop.permute.xlu0 %919
        %921 = vrot.lane.b32.xlu0 %v862, 112
        %v922 = vpop.permute.xlu0 %921
        %923 = vrot.lane.b32.xlu0 %v866, 112
        %v924 = vpop.permute.xlu0 %923
        %925 = vrot.lane.b32.xlu0 %v868, 112
        %v926 = vpop.permute.xlu0 %925
        %927 = vrot.lane.b32.xlu0 %v870, 112
        %v928 = vpop.permute.xlu0 %927
        %929 = vrot.lane.b32.xlu0 %v869, 112
        %v930 = vpop.permute.xlu0 %929
        %931 = vrot.lane.b32.xlu0 %v873, 112
        %v932 = vpop.permute.xlu0 %931
        %933 = vrot.lane.b32.xlu0 %v875, 112
        %v934 = vpop.permute.xlu0 %933
        %935 = vrot.lane.b32.xlu0 %v877, 112
        %v936 = vpop.permute.xlu0 %935
        %937 = vrot.lane.b32.xlu0 %v876, 112
        %v938 = vpop.permute.xlu0 %937
        %939 = vrot.lane.b32.xlu0 %v880, 112
        %v940 = vpop.permute.xlu0 %939
        %941 = vrot.lane.b32.xlu0 %v882, 112
        %v942 = vpop.permute.xlu0 %941
        %943 = vrot.lane.b32.xlu0 %v884, 112
        %v944 = vpop.permute.xlu0 %943
        %945 = vrot.lane.b32.xlu0 %v883, 112
        %v946 = vpop.permute.xlu0 %945
        %947 = vrot.lane.b32.xlu0 %v887, 112
        %v948 = vpop.permute.xlu0 %947
        %949 = vrot.lane.b32.xlu0 %v889, 112
        %v950 = vpop.permute.xlu0 %949
        %951 = vrot.lane.b32.xlu0 %v891, 112
        %v952 = vpop.permute.xlu0 %951
        %953 = vrot.lane.b32.xlu0 %v890, 112
        %v954 = vpop.permute.xlu0 %953
        %955 = vrot.lane.b32.xlu0 %v894, 112
        %v956 = vpop.permute.xlu0 %955
        %957 = vrot.lane.b32.xlu0 %v896, 112
        %v958 = vpop.permute.xlu0 %957
        %959 = vrot.lane.b32.xlu0 %v898, 112
        %v960 = vpop.permute.xlu0 %959
        %961 = vrot.lane.b32.xlu0 %v897, 112
        %v962 = vpop.permute.xlu0 %961
        %v995 = vadd.f32 %v810, %v900
        %v996 = vadd.f32 %v811, %v902
        %v997 = vadd.f32 %v812, %v904
        %v998 = vadd.f32 %v813, %v906
        %v999 = vadd.f32 %v814, %v908
        %v1000 = vadd.f32 %v815, %v910
        %v1001 = vadd.f32 %v816, %v912
        %v1002 = vadd.f32 %v817, %v914
        %v1003 = vadd.f32 %v818, %v916
        %v1004 = vadd.f32 %v819, %v918
        %v1005 = vadd.f32 %v820, %v920
        %v1006 = vadd.f32 %v821, %v922
        %v1007 = vadd.f32 %v822, %v924
        %v1008 = vadd.f32 %v823, %v926
        %v1009 = vadd.f32 %v824, %v928
        %v1010 = vadd.f32 %v825, %v930
        %v1011 = vadd.f32 %v826, %v932
        %v1012 = vadd.f32 %v827, %v934
        %v1013 = vadd.f32 %v828, %v936
        %v1014 = vadd.f32 %v829, %v938
        %v1015 = vadd.f32 %v830, %v940
        %v1016 = vadd.f32 %v831, %v942
        %v1017 = vadd.f32 %v832, %v944
        %v1018 = vadd.f32 %v833, %v946
        %v1019 = vadd.f32 %v834, %v948
        %v1020 = vadd.f32 %v835, %v950
        %v1021 = vadd.f32 %v836, %v952
        %v1022 = vadd.f32 %v837, %v954
        %v1023 = vadd.f32 %v838, %v956
        %v1024 = vadd.f32 %v839, %v958
        %v1025 = vadd.f32 %v840, %v960
        %v1026 = vadd.f32 %v841, %v962
        %vm1027 = vcmask 64512
        %v1028 = vsel %vm1027, %v995, -inf
        %v1029 = vsel %vm1027, %v996, -inf
        %v1030 = vmax.f32 %v1028, %v1029
        %v1031 = vsel %vm1027, %v997, -inf
        %v1032 = vmax.f32 %v1030, %v1031
        %vm1033 = vcmask 62464
        %v1034 = vsel %vm1033, %v998, -inf
        %v1035 = vmax.f32 %v1032, %v1034
        %v1036 = vrot.slane %v1035, 4
        %v1037 = vmax.f32 %v1035, %v1036
        %v1038 = vrot.slane %v1037, 2
        %v1039 = vmax.f32 %v1037, %v1038
        %v1040 = vrot.slane %v1039, 1
        %v1041 = vmax.f32 %v1039, %v1040
        %v1042 = vsel %vm1027, %v999, -inf
        %v1043 = vsel %vm1027, %v1000, -inf
        %v1044 = vmax.f32 %v1042, %v1043
        %v1045 = vsel %vm1027, %v1001, -inf
        %v1046 = vmax.f32 %v1044, %v1045
        %v1047 = vsel %vm1033, %v1002, -inf
        %v1048 = vmax.f32 %v1046, %v1047
        %v1049 = vrot.slane %v1048, 4
        %v1050 = vmax.f32 %v1048, %v1049
        %v1051 = vrot.slane %v1050, 2
        %v1052 = vmax.f32 %v1050, %v1051
        %v1053 = vrot.slane %v1052, 1
        %v1054 = vmax.f32 %v1052, %v1053
        %v1055 = vsel %vm1027, %v1003, -inf
        %v1056 = vsel %vm1027, %v1004, -inf
        %v1057 = vmax.f32 %v1055, %v1056
        %v1058 = vsel %vm1027, %v1005, -inf
        %v1059 = vmax.f32 %v1057, %v1058
        %v1060 = vsel %vm1033, %v1006, -inf
        %v1061 = vmax.f32 %v1059, %v1060
        %v1062 = vrot.slane %v1061, 4
        %v1063 = vmax.f32 %v1061, %v1062
        %v1064 = vrot.slane %v1063, 2
        %v1065 = vmax.f32 %v1063, %v1064
        %v1066 = vrot.slane %v1065, 1
        %v1067 = vmax.f32 %v1065, %v1066
        %v1068 = vsel %vm1027, %v1007, -inf
        %v1069 = vsel %vm1027, %v1008, -inf
        %v1070 = vmax.f32 %v1068, %v1069
        %v1071 = vsel %vm1027, %v1009, -inf
        %v1072 = vmax.f32 %v1070, %v1071
        %v1073 = vsel %vm1033, %v1010, -inf
        %v1074 = vmax.f32 %v1072, %v1073
        %v1075 = vrot.slane %v1074, 4
        %v1076 = vmax.f32 %v1074, %v1075
        %v1077 = vrot.slane %v1076, 2
        %v1078 = vmax.f32 %v1076, %v1077
        %v1079 = vrot.slane %v1078, 1
        %v1080 = vmax.f32 %v1078, %v1079
        %v1081 = vsel %vm1027, %v1011, -inf
        %v1082 = vsel %vm1027, %v1012, -inf
        %v1083 = vmax.f32 %v1081, %v1082
        %v1084 = vsel %vm1027, %v1013, -inf
        %v1085 = vmax.f32 %v1083, %v1084
        %v1086 = vsel %vm1033, %v1014, -inf
        %v1087 = vmax.f32 %v1085, %v1086
        %v1088 = vrot.slane %v1087, 4
        %v1089 = vmax.f32 %v1087, %v1088
        %v1090 = vrot.slane %v1089, 2
        %v1091 = vmax.f32 %v1089, %v1090
        %v1092 = vrot.slane %v1091, 1
        %v1093 = vmax.f32 %v1091, %v1092
        %v1094 = vsel %vm1027, %v1015, -inf
        %v1095 = vsel %vm1027, %v1016, -inf
        %v1096 = vmax.f32 %v1094, %v1095
        %v1097 = vsel %vm1027, %v1017, -inf
        %v1098 = vmax.f32 %v1096, %v1097
        %v1099 = vsel %vm1033, %v1018, -inf
        %v1100 = vmax.f32 %v1098, %v1099
        %v1101 = vrot.slane %v1100, 4
        %v1102 = vmax.f32 %v1100, %v1101
        %v1103 = vrot.slane %v1102, 2
        %v1104 = vmax.f32 %v1102, %v1103
        %v1105 = vrot.slane %v1104, 1
        %v1106 = vmax.f32 %v1104, %v1105
        %v1107 = vsel %vm1027, %v1019, -inf
        %v1108 = vsel %vm1027, %v1020, -inf
        %v1109 = vmax.f32 %v1107, %v1108
        %v1110 = vsel %vm1027, %v1021, -inf
        %v1111 = vmax.f32 %v1109, %v1110
        %v1112 = vsel %vm1033, %v1022, -inf
        %v1113 = vmax.f32 %v1111, %v1112
        %v1114 = vrot.slane %v1113, 4
        %v1115 = vmax.f32 %v1113, %v1114
        %v1116 = vrot.slane %v1115, 2
        %v1117 = vmax.f32 %v1115, %v1116
        %v1118 = vrot.slane %v1117, 1
        %v1119 = vmax.f32 %v1117, %v1118
        %v1120 = vsel %vm1027, %v1023, -inf
        %v1121 = vsel %vm1027, %v1024, -inf
        %v1122 = vmax.f32 %v1120, %v1121
        %v1123 = vsel %vm1027, %v1025, -inf
        %v1124 = vmax.f32 %v1122, %v1123
        %v1125 = vsel %vm1033, %v1026, -inf
        %v1126 = vmax.f32 %v1124, %v1125
        %v1127 = vrot.slane %v1126, 4
        %v1128 = vmax.f32 %v1126, %v1127
        %v1129 = vrot.slane %v1128, 2
        %v1130 = vmax.f32 %v1128, %v1129
        %v1131 = vrot.slane %v1130, 1
        %v1132 = vmax.f32 %v1130, %v1131
        %v1133 = vlaneseq
        %v1134 = vshrl.u32 %v1133, 7
        %v1135 = vsub.s32 0, %v1134
        %v1136 = vrot.slane %v624, %v1135
        %v1137 = vadd.f32 %v1041, %v1136
        %v1138 = vadd.f32 %v1054, %v1136
        %v1139 = vadd.f32 %v1067, %v1136
        %v1140 = vadd.f32 %v1080, %v1136
        %v1141 = vadd.f32 %v1093, %v1136
        %v1142 = vadd.f32 %v1106, %v1136
        %v1143 = vadd.f32 %v1119, %v1136
        %v1144 = vadd.f32 %v1132, %v1136
        %v1145 = vmax.f32 %v1137, 0.0
        %v1146 = vmax.f32 %v1138, 0.0
        %v1147 = vmax.f32 %v1139, 0.0
        %v1148 = vmax.f32 %v1140, 0.0
        %v1149 = vmax.f32 %v1141, 0.0
        %v1150 = vmax.f32 %v1142, 0.0
        %v1151 = vmax.f32 %v1143, 0.0
        %v1152 = vmax.f32 %v1144, 0.0
        %vm1153 = vcmask 1044480
        %v1154 = vrot.slane %v466, 3
        %v1155 = vrot.slane %v471, 3
        %v1156 = vsel %vm1153, %v1154, %v1155
        %v1157 = vrot.slane %v476, 3
        %v1158 = vsel %vm1153, %v1155, %v1157
        %v1159 = vrot.slane %v481, 3
        %v1160 = vsel %vm1153, %v1157, %v1159
        %v1161 = vrot.slane %v486, 3
        %v1162 = vrot.slane %v491, 3
        %v1163 = vsel %vm1153, %v1161, %v1162
        %v1164 = vrot.slane %v496, 3
        %v1165 = vsel %vm1153, %v1162, %v1164
        %v1166 = vrot.slane %v501, 3
        %v1167 = vsel %vm1153, %v1164, %v1166
        %v1168 = vrot.slane %v506, 3
        %v1169 = vrot.slane %v511, 3
        %v1170 = vsel %vm1153, %v1168, %v1169
        %v1171 = vrot.slane %v516, 3
        %v1172 = vsel %vm1153, %v1169, %v1171
        %v1173 = vrot.slane %v521, 3
        %v1174 = vsel %vm1153, %v1171, %v1173
        %v1175 = vrot.slane %v526, 3
        %v1176 = vrot.slane %v531, 3
        %v1177 = vsel %vm1153, %v1175, %v1176
        %v1178 = vrot.slane %v536, 3
        %v1179 = vsel %vm1153, %v1176, %v1178
        %v1180 = vrot.slane %v541, 3
        %v1181 = vsel %vm1153, %v1178, %v1180
        %v1182 = vrot.slane %v546, 3
        %v1183 = vrot.slane %v551, 3
        %v1184 = vsel %vm1153, %v1182, %v1183
        %v1185 = vrot.slane %v556, 3
        %v1186 = vsel %vm1153, %v1183, %v1185
        %v1187 = vrot.slane %v561, 3
        %v1188 = vsel %vm1153, %v1185, %v1187
        %v1189 = vrot.slane %v566, 3
        %v1190 = vrot.slane %v571, 3
        %v1191 = vsel %vm1153, %v1189, %v1190
        %v1192 = vrot.slane %v576, 3
        %v1193 = vsel %vm1153, %v1190, %v1192
        %v1194 = vrot.slane %v581, 3
        %v1195 = vsel %vm1153, %v1192, %v1194
        %v1196 = vrot.slane %v586, 3
        %v1197 = vrot.slane %v591, 3
        %v1198 = vsel %vm1153, %v1196, %v1197
        %v1199 = vrot.slane %v596, 3
        %v1200 = vsel %vm1153, %v1197, %v1199
        %v1201 = vrot.slane %v601, 3
        %v1202 = vsel %vm1153, %v1199, %v1201
        %v1203 = vrot.slane %v606, 3
        %v1204 = vrot.slane %v611, 3
        %v1205 = vsel %vm1153, %v1203, %v1204
        %v1206 = vrot.slane %v616, 3
        %v1207 = vsel %vm1153, %v1204, %v1206
        %v1208 = vrot.slane %v621, 3
        %v1209 = vsel %vm1153, %v1206, %v1208
        %1210 = vrot.lane.b32.xlu0 %v1156, 104
        %v1211 = vpop.permute.xlu0 %1210
        %1212 = vrot.lane.b32.xlu0 %v1158, 104
        %v1213 = vpop.permute.xlu0 %1212
        %1214 = vrot.lane.b32.xlu0 %v1160, 104
        %v1215 = vpop.permute.xlu0 %1214
        %1216 = vrot.lane.b32.xlu0 %v1159, 104
        %v1217 = vpop.permute.xlu0 %1216
        %1218 = vrot.lane.b32.xlu0 %v1163, 104
        %v1219 = vpop.permute.xlu0 %1218
        %1220 = vrot.lane.b32.xlu0 %v1165, 104
        %v1221 = vpop.permute.xlu0 %1220
        %1222 = vrot.lane.b32.xlu0 %v1167, 104
        %v1223 = vpop.permute.xlu0 %1222
        %1224 = vrot.lane.b32.xlu0 %v1166, 104
        %v1225 = vpop.permute.xlu0 %1224
        %1226 = vrot.lane.b32.xlu0 %v1170, 104
        %v1227 = vpop.permute.xlu0 %1226
        %1228 = vrot.lane.b32.xlu0 %v1172, 104
        %v1229 = vpop.permute.xlu0 %1228
        %1230 = vrot.lane.b32.xlu0 %v1174, 104
        %v1231 = vpop.permute.xlu0 %1230
        %1232 = vrot.lane.b32.xlu0 %v1173, 104
        %v1233 = vpop.permute.xlu0 %1232
        %1234 = vrot.lane.b32.xlu0 %v1177, 104
        %v1235 = vpop.permute.xlu0 %1234
        %1236 = vrot.lane.b32.xlu0 %v1179, 104
        %v1237 = vpop.permute.xlu0 %1236
        %1238 = vrot.lane.b32.xlu0 %v1181, 104
        %v1239 = vpop.permute.xlu0 %1238
        %1240 = vrot.lane.b32.xlu0 %v1180, 104
        %v1241 = vpop.permute.xlu0 %1240
        %1242 = vrot.lane.b32.xlu0 %v1184, 104
        %v1243 = vpop.permute.xlu0 %1242
        %1244 = vrot.lane.b32.xlu0 %v1186, 104
        %v1245 = vpop.permute.xlu0 %1244
        %1246 = vrot.lane.b32.xlu0 %v1188, 104
        %v1247 = vpop.permute.xlu0 %1246
        %1248 = vrot.lane.b32.xlu0 %v1187, 104
        %v1249 = vpop.permute.xlu0 %1248
        %1250 = vrot.lane.b32.xlu0 %v1191, 104
        %v1251 = vpop.permute.xlu0 %1250
        %1252 = vrot.lane.b32.xlu0 %v1193, 104
        %v1253 = vpop.permute.xlu0 %1252
        %1254 = vrot.lane.b32.xlu0 %v1195, 104
        %v1255 = vpop.permute.xlu0 %1254
        %1256 = vrot.lane.b32.xlu0 %v1194, 104
        %v1257 = vpop.permute.xlu0 %1256
        %1258 = vrot.lane.b32.xlu0 %v1198, 104
        %v1259 = vpop.permute.xlu0 %1258
        %1260 = vrot.lane.b32.xlu0 %v1200, 104
        %v1261 = vpop.permute.xlu0 %1260
        %1262 = vrot.lane.b32.xlu0 %v1202, 104
        %v1263 = vpop.permute.xlu0 %1262
        %1264 = vrot.lane.b32.xlu0 %v1201, 104
        %v1265 = vpop.permute.xlu0 %1264
        %1266 = vrot.lane.b32.xlu0 %v1205, 104
        %v1267 = vpop.permute.xlu0 %1266
        %1268 = vrot.lane.b32.xlu0 %v1207, 104
        %v1269 = vpop.permute.xlu0 %1268
        %1270 = vrot.lane.b32.xlu0 %v1209, 104
        %v1271 = vpop.permute.xlu0 %1270
        %1272 = vrot.lane.b32.xlu0 %v1208, 104
        %v1273 = vpop.permute.xlu0 %1272
        %v1306 = vadd.f32 %v995, %v1211
        %v1307 = vadd.f32 %v996, %v1213
        %v1308 = vadd.f32 %v997, %v1215
        %v1309 = vadd.f32 %v998, %v1217
        %v1310 = vadd.f32 %v999, %v1219
        %v1311 = vadd.f32 %v1000, %v1221
        %v1312 = vadd.f32 %v1001, %v1223
        %v1313 = vadd.f32 %v1002, %v1225
        %v1314 = vadd.f32 %v1003, %v1227
        %v1315 = vadd.f32 %v1004, %v1229
        %v1316 = vadd.f32 %v1005, %v1231
        %v1317 = vadd.f32 %v1006, %v1233
        %v1318 = vadd.f32 %v1007, %v1235
        %v1319 = vadd.f32 %v1008, %v1237
        %v1320 = vadd.f32 %v1009, %v1239
        %v1321 = vadd.f32 %v1010, %v1241
        %v1322 = vadd.f32 %v1011, %v1243
        %v1323 = vadd.f32 %v1012, %v1245
        %v1324 = vadd.f32 %v1013, %v1247
        %v1325 = vadd.f32 %v1014, %v1249
        %v1326 = vadd.f32 %v1015, %v1251
        %v1327 = vadd.f32 %v1016, %v1253
        %v1328 = vadd.f32 %v1017, %v1255
        %v1329 = vadd.f32 %v1018, %v1257
        %v1330 = vadd.f32 %v1019, %v1259
        %v1331 = vadd.f32 %v1020, %v1261
        %v1332 = vadd.f32 %v1021, %v1263
        %v1333 = vadd.f32 %v1022, %v1265
        %v1334 = vadd.f32 %v1023, %v1267
        %v1335 = vadd.f32 %v1024, %v1269
        %v1336 = vadd.f32 %v1025, %v1271
        %v1337 = vadd.f32 %v1026, %v1273
        %vm1338 = vcmask 261312
        %v1339 = vsel %vm1338, %v1306, -inf
        %v1340 = vsel %vm1338, %v1307, -inf
        %v1341 = vmax.f32 %v1339, %v1340
        %v1342 = vsel %vm1338, %v1308, -inf
        %v1343 = vmax.f32 %v1341, %v1342
        %vm1344 = vcmask 258240
        %v1345 = vsel %vm1344, %v1309, -inf
        %v1346 = vmax.f32 %v1343, %v1345
        %v1347 = vrot.slane %v1346, 4
        %v1348 = vmax.f32 %v1346, %v1347
        %v1349 = vrot.slane %v1348, 2
        %v1350 = vmax.f32 %v1348, %v1349
        %v1351 = vrot.slane %v1350, 1
        %v1352 = vmax.f32 %v1350, %v1351
        %v1353 = vsel %vm1338, %v1310, -inf
        %v1354 = vsel %vm1338, %v1311, -inf
        %v1355 = vmax.f32 %v1353, %v1354
        %v1356 = vsel %vm1338, %v1312, -inf
        %v1357 = vmax.f32 %v1355, %v1356
        %v1358 = vsel %vm1344, %v1313, -inf
        %v1359 = vmax.f32 %v1357, %v1358
        %v1360 = vrot.slane %v1359, 4
        %v1361 = vmax.f32 %v1359, %v1360
        %v1362 = vrot.slane %v1361, 2
        %v1363 = vmax.f32 %v1361, %v1362
        %v1364 = vrot.slane %v1363, 1
        %v1365 = vmax.f32 %v1363, %v1364
        %v1366 = vsel %vm1338, %v1314, -inf
        %v1367 = vsel %vm1338, %v1315, -inf
        %v1368 = vmax.f32 %v1366, %v1367
        %v1369 = vsel %vm1338, %v1316, -inf
        %v1370 = vmax.f32 %v1368, %v1369
        %v1371 = vsel %vm1344, %v1317, -inf
        %v1372 = vmax.f32 %v1370, %v1371
        %v1373 = vrot.slane %v1372, 4
        %v1374 = vmax.f32 %v1372, %v1373
        %v1375 = vrot.slane %v1374, 2
        %v1376 = vmax.f32 %v1374, %v1375
        %v1377 = vrot.slane %v1376, 1
        %v1378 = vmax.f32 %v1376, %v1377
        %v1379 = vsel %vm1338, %v1318, -inf
        %v1380 = vsel %vm1338, %v1319, -inf
        %v1381 = vmax.f32 %v1379, %v1380
        %v1382 = vsel %vm1338, %v1320, -inf
        %v1383 = vmax.f32 %v1381, %v1382
        %v1384 = vsel %vm1344, %v1321, -inf
        %v1385 = vmax.f32 %v1383, %v1384
        %v1386 = vrot.slane %v1385, 4
        %v1387 = vmax.f32 %v1385, %v1386
        %v1388 = vrot.slane %v1387, 2
        %v1389 = vmax.f32 %v1387, %v1388
        %v1390 = vrot.slane %v1389, 1
        %v1391 = vmax.f32 %v1389, %v1390
        %v1392 = vsel %vm1338, %v1322, -inf
        %v1393 = vsel %vm1338, %v1323, -inf
        %v1394 = vmax.f32 %v1392, %v1393
        %v1395 = vsel %vm1338, %v1324, -inf
        %v1396 = vmax.f32 %v1394, %v1395
        %v1397 = vsel %vm1344, %v1325, -inf
        %v1398 = vmax.f32 %v1396, %v1397
        %v1399 = vrot.slane %v1398, 4
        %v1400 = vmax.f32 %v1398, %v1399
        %v1401 = vrot.slane %v1400, 2
        %v1402 = vmax.f32 %v1400, %v1401
        %v1403 = vrot.slane %v1402, 1
        %v1404 = vmax.f32 %v1402, %v1403
        %v1405 = vsel %vm1338, %v1326, -inf
        %v1406 = vsel %vm1338, %v1327, -inf
        %v1407 = vmax.f32 %v1405, %v1406
        %v1408 = vsel %vm1338, %v1328, -inf
        %v1409 = vmax.f32 %v1407, %v1408
        %v1410 = vsel %vm1344, %v1329, -inf
        %v1411 = vmax.f32 %v1409, %v1410
        %v1412 = vrot.slane %v1411, 4
        %v1413 = vmax.f32 %v1411, %v1412
        %v1414 = vrot.slane %v1413, 2
        %v1415 = vmax.f32 %v1413, %v1414
        %v1416 = vrot.slane %v1415, 1
        %v1417 = vmax.f32 %v1415, %v1416
        %v1418 = vsel %vm1338, %v1330, -inf
        %v1419 = vsel %vm1338, %v1331, -inf
        %v1420 = vmax.f32 %v1418, %v1419
        %v1421 = vsel %vm1338, %v1332, -inf
        %v1422 = vmax.f32 %v1420, %v1421
        %v1423 = vsel %vm1344, %v1333, -inf
        %v1424 = vmax.f32 %v1422, %v1423
        %v1425 = vrot.slane %v1424, 4
        %v1426 = vmax.f32 %v1424, %v1425
        %v1427 = vrot.slane %v1426, 2
        %v1428 = vmax.f32 %v1426, %v1427
        %v1429 = vrot.slane %v1428, 1
        %v1430 = vmax.f32 %v1428, %v1429
        %v1431 = vsel %vm1338, %v1334, -inf
        %v1432 = vsel %vm1338, %v1335, -inf
        %v1433 = vmax.f32 %v1431, %v1432
        %v1434 = vsel %vm1338, %v1336, -inf
        %v1435 = vmax.f32 %v1433, %v1434
        %v1436 = vsel %vm1344, %v1337, -inf
        %v1437 = vmax.f32 %v1435, %v1436
        %v1438 = vrot.slane %v1437, 4
        %v1439 = vmax.f32 %v1437, %v1438
        %v1440 = vrot.slane %v1439, 2
        %v1441 = vmax.f32 %v1439, %v1440
        %v1442 = vrot.slane %v1441, 1
        %v1443 = vmax.f32 %v1441, %v1442
        %v1444 = vlaneseq
        %v1445 = vshrl.u32 %v1444, 7
        %v1446 = vsub.s32 1, %v1445
        %v1447 = vrot.slane %v624, %v1446
        %1449 = vrot.lane.b32.xlu0 %v1447, 24
        %v1450 = vpop.permute.xlu0 %1449
        %v1452 = vadd.f32 %v1352, %v1450
        %v1453 = vadd.f32 %v1365, %v1450
        %v1454 = vadd.f32 %v1378, %v1450
        %v1455 = vadd.f32 %v1391, %v1450
        %v1456 = vadd.f32 %v1404, %v1450
        %v1457 = vadd.f32 %v1417, %v1450
        %v1458 = vadd.f32 %v1430, %v1450
        %v1459 = vadd.f32 %v1443, %v1450
        %v1460 = vmax.f32 %v1452, 0.0
        %v1461 = vmax.f32 %v1453, 0.0
        %v1462 = vmax.f32 %v1454, 0.0
        %v1463 = vmax.f32 %v1455, 0.0
        %v1464 = vmax.f32 %v1456, 0.0
        %v1465 = vmax.f32 %v1457, 0.0
        %v1466 = vmax.f32 %v1458, 0.0
        %v1467 = vmax.f32 %v1459, 0.0
        %vm1468 = vcmask 1043456
        %v1469 = vrot.slane %v466, 4
        %v1470 = vrot.slane %v471, 4
        %v1471 = vsel %vm1468, %v1469, %v1470
        %v1472 = vrot.slane %v476, 4
        %v1473 = vsel %vm1468, %v1470, %v1472
        %v1474 = vrot.slane %v481, 4
        %v1475 = vsel %vm1468, %v1472, %v1474
        %v1476 = vrot.slane %v486, 4
        %v1477 = vrot.slane %v491, 4
        %v1478 = vsel %vm1468, %v1476, %v1477
        %v1479 = vrot.slane %v496, 4
        %v1480 = vsel %vm1468, %v1477, %v1479
        %v1481 = vrot.slane %v501, 4
        %v1482 = vsel %vm1468, %v1479, %v1481
        %v1483 = vrot.slane %v506, 4
        %v1484 = vrot.slane %v511, 4
        %v1485 = vsel %vm1468, %v1483, %v1484
        %v1486 = vrot.slane %v516, 4
        %v1487 = vsel %vm1468, %v1484, %v1486
        %v1488 = vrot.slane %v521, 4
        %v1489 = vsel %vm1468, %v1486, %v1488
        %v1490 = vrot.slane %v526, 4
        %v1491 = vrot.slane %v531, 4
        %v1492 = vsel %vm1468, %v1490, %v1491
        %v1493 = vrot.slane %v536, 4
        %v1494 = vsel %vm1468, %v1491, %v1493
        %v1495 = vrot.slane %v541, 4
        %v1496 = vsel %vm1468, %v1493, %v1495
        %v1497 = vrot.slane %v546, 4
        %v1498 = vrot.slane %v551, 4
        %v1499 = vsel %vm1468, %v1497, %v1498
        %v1500 = vrot.slane %v556, 4
        %v1501 = vsel %vm1468, %v1498, %v1500
        %v1502 = vrot.slane %v561, 4
        %v1503 = vsel %vm1468, %v1500, %v1502
        %v1504 = vrot.slane %v566, 4
        %v1505 = vrot.slane %v571, 4
        %v1506 = vsel %vm1468, %v1504, %v1505
        %v1507 = vrot.slane %v576, 4
        %v1508 = vsel %vm1468, %v1505, %v1507
        %v1509 = vrot.slane %v581, 4
        %v1510 = vsel %vm1468, %v1507, %v1509
        %v1511 = vrot.slane %v586, 4
        %v1512 = vrot.slane %v591, 4
        %v1513 = vsel %vm1468, %v1511, %v1512
        %v1514 = vrot.slane %v596, 4
        %v1515 = vsel %vm1468, %v1512, %v1514
        %v1516 = vrot.slane %v601, 4
        %v1517 = vsel %vm1468, %v1514, %v1516
        %v1518 = vrot.slane %v606, 4
        %v1519 = vrot.slane %v611, 4
        %v1520 = vsel %vm1468, %v1518, %v1519
        %v1521 = vrot.slane %v616, 4
        %v1522 = vsel %vm1468, %v1519, %v1521
        %v1523 = vrot.slane %v621, 4
        %v1524 = vsel %vm1468, %v1521, %v1523
        %1525 = vrot.lane.b32.xlu0 %v1471, 96
        %v1526 = vpop.permute.xlu0 %1525
        %1527 = vrot.lane.b32.xlu0 %v1473, 96
        %v1528 = vpop.permute.xlu0 %1527
        %1529 = vrot.lane.b32.xlu0 %v1475, 96
        %v1530 = vpop.permute.xlu0 %1529
        %1531 = vrot.lane.b32.xlu0 %v1474, 96
        %v1532 = vpop.permute.xlu0 %1531
        %1533 = vrot.lane.b32.xlu0 %v1478, 96
        %v1534 = vpop.permute.xlu0 %1533
        %1535 = vrot.lane.b32.xlu0 %v1480, 96
        %v1536 = vpop.permute.xlu0 %1535
        %1537 = vrot.lane.b32.xlu0 %v1482, 96
        %v1538 = vpop.permute.xlu0 %1537
        %1539 = vrot.lane.b32.xlu0 %v1481, 96
        %v1540 = vpop.permute.xlu0 %1539
        %1541 = vrot.lane.b32.xlu0 %v1485, 96
        %v1542 = vpop.permute.xlu0 %1541
        %1543 = vrot.lane.b32.xlu0 %v1487, 96
        %v1544 = vpop.permute.xlu0 %1543
        %1545 = vrot.lane.b32.xlu0 %v1489, 96
        %v1546 = vpop.permute.xlu0 %1545
        %1547 = vrot.lane.b32.xlu0 %v1488, 96
        %v1548 = vpop.permute.xlu0 %1547
        %1549 = vrot.lane.b32.xlu0 %v1492, 96
        %v1550 = vpop.permute.xlu0 %1549
        %1551 = vrot.lane.b32.xlu0 %v1494, 96
        %v1552 = vpop.permute.xlu0 %1551
        %1553 = vrot.lane.b32.xlu0 %v1496, 96
        %v1554 = vpop.permute.xlu0 %1553
        %1555 = vrot.lane.b32.xlu0 %v1495, 96
        %v1556 = vpop.permute.xlu0 %1555
        %1557 = vrot.lane.b32.xlu0 %v1499, 96
        %v1558 = vpop.permute.xlu0 %1557
        %1559 = vrot.lane.b32.xlu0 %v1501, 96
        %v1560 = vpop.permute.xlu0 %1559
        %1561 = vrot.lane.b32.xlu0 %v1503, 96
        %v1562 = vpop.permute.xlu0 %1561
        %1563 = vrot.lane.b32.xlu0 %v1502, 96
        %v1564 = vpop.permute.xlu0 %1563
        %1565 = vrot.lane.b32.xlu0 %v1506, 96
        %v1566 = vpop.permute.xlu0 %1565
        %1567 = vrot.lane.b32.xlu0 %v1508, 96
        %v1568 = vpop.permute.xlu0 %1567
        %1569 = vrot.lane.b32.xlu0 %v1510, 96
        %v1570 = vpop.permute.xlu0 %1569
        %1571 = vrot.lane.b32.xlu0 %v1509, 96
        %v1572 = vpop.permute.xlu0 %1571
        %1573 = vrot.lane.b32.xlu0 %v1513, 96
        %v1574 = vpop.permute.xlu0 %1573
        %1575 = vrot.lane.b32.xlu0 %v1515, 96
        %v1576 = vpop.permute.xlu0 %1575
        %1577 = vrot.lane.b32.xlu0 %v1517, 96
        %v1578 = vpop.permute.xlu0 %1577
        %1579 = vrot.lane.b32.xlu0 %v1516, 96
        %v1580 = vpop.permute.xlu0 %1579
        %1581 = vrot.lane.b32.xlu0 %v1520, 96
        %v1582 = vpop.permute.xlu0 %1581
        %1583 = vrot.lane.b32.xlu0 %v1522, 96
        %v1584 = vpop.permute.xlu0 %1583
        %1585 = vrot.lane.b32.xlu0 %v1524, 96
        %v1586 = vpop.permute.xlu0 %1585
        %1587 = vrot.lane.b32.xlu0 %v1523, 96
        %v1588 = vpop.permute.xlu0 %1587
        %v1621 = vadd.f32 %v1306, %v1526
        %v1622 = vadd.f32 %v1307, %v1528
        %v1623 = vadd.f32 %v1308, %v1530
        %v1624 = vadd.f32 %v1309, %v1532
        %v1625 = vadd.f32 %v1310, %v1534
        %v1626 = vadd.f32 %v1311, %v1536
        %v1627 = vadd.f32 %v1312, %v1538
        %v1628 = vadd.f32 %v1313, %v1540
        %v1629 = vadd.f32 %v1314, %v1542
        %v1630 = vadd.f32 %v1315, %v1544
        %v1631 = vadd.f32 %v1316, %v1546
        %v1632 = vadd.f32 %v1317, %v1548
        %v1633 = vadd.f32 %v1318, %v1550
        %v1634 = vadd.f32 %v1319, %v1552
        %v1635 = vadd.f32 %v1320, %v1554
        %v1636 = vadd.f32 %v1321, %v1556
        %v1637 = vadd.f32 %v1322, %v1558
        %v1638 = vadd.f32 %v1323, %v1560
        %v1639 = vadd.f32 %v1324, %v1562
        %v1640 = vadd.f32 %v1325, %v1564
        %v1641 = vadd.f32 %v1326, %v1566
        %v1642 = vadd.f32 %v1327, %v1568
        %v1643 = vadd.f32 %v1328, %v1570
        %v1644 = vadd.f32 %v1329, %v1572
        %v1645 = vadd.f32 %v1330, %v1574
        %v1646 = vadd.f32 %v1331, %v1576
        %v1647 = vadd.f32 %v1332, %v1578
        %v1648 = vadd.f32 %v1333, %v1580
        %v1649 = vadd.f32 %v1334, %v1582
        %v1650 = vadd.f32 %v1335, %v1584
        %v1651 = vadd.f32 %v1336, %v1586
        %v1652 = vadd.f32 %v1337, %v1588
        %vm1653 = vcmask 523712
        %v1654 = vsel %vm1653, %v1621, -inf
        %v1655 = vsel %vm1653, %v1622, -inf
        %v1656 = vmax.f32 %v1654, %v1655
        %v1657 = vsel %vm1653, %v1623, -inf
        %v1658 = vmax.f32 %v1656, %v1657
        %vm1659 = vcmask 519616
        %v1660 = vsel %vm1659, %v1624, -inf
        %v1661 = vmax.f32 %v1658, %v1660
        %v1662 = vrot.slane %v1661, 4
        %v1663 = vmax.f32 %v1661, %v1662
        %v1664 = vrot.slane %v1663, 2
        %v1665 = vmax.f32 %v1663, %v1664
        %v1666 = vrot.slane %v1665, 1
        %v1667 = vmax.f32 %v1665, %v1666
        %v1668 = vsel %vm1653, %v1625, -inf
        %v1669 = vsel %vm1653, %v1626, -inf
        %v1670 = vmax.f32 %v1668, %v1669
        %v1671 = vsel %vm1653, %v1627, -inf
        %v1672 = vmax.f32 %v1670, %v1671
        %v1673 = vsel %vm1659, %v1628, -inf
        %v1674 = vmax.f32 %v1672, %v1673
        %v1675 = vrot.slane %v1674, 4
        %v1676 = vmax.f32 %v1674, %v1675
        %v1677 = vrot.slane %v1676, 2
        %v1678 = vmax.f32 %v1676, %v1677
        %v1679 = vrot.slane %v1678, 1
        %v1680 = vmax.f32 %v1678, %v1679
        %v1681 = vsel %vm1653, %v1629, -inf
        %v1682 = vsel %vm1653, %v1630, -inf
        %v1683 = vmax.f32 %v1681, %v1682
        %v1684 = vsel %vm1653, %v1631, -inf
        %v1685 = vmax.f32 %v1683, %v1684
        %v1686 = vsel %vm1659, %v1632, -inf
        %v1687 = vmax.f32 %v1685, %v1686
        %v1688 = vrot.slane %v1687, 4
        %v1689 = vmax.f32 %v1687, %v1688
        %v1690 = vrot.slane %v1689, 2
        %v1691 = vmax.f32 %v1689, %v1690
        %v1692 = vrot.slane %v1691, 1
        %v1693 = vmax.f32 %v1691, %v1692
        %v1694 = vsel %vm1653, %v1633, -inf
        %v1695 = vsel %vm1653, %v1634, -inf
        %v1696 = vmax.f32 %v1694, %v1695
        %v1697 = vsel %vm1653, %v1635, -inf
        %v1698 = vmax.f32 %v1696, %v1697
        %v1699 = vsel %vm1659, %v1636, -inf
        %v1700 = vmax.f32 %v1698, %v1699
        %v1701 = vrot.slane %v1700, 4
        %v1702 = vmax.f32 %v1700, %v1701
        %v1703 = vrot.slane %v1702, 2
        %v1704 = vmax.f32 %v1702, %v1703
        %v1705 = vrot.slane %v1704, 1
        %v1706 = vmax.f32 %v1704, %v1705
        %v1707 = vsel %vm1653, %v1637, -inf
        %v1708 = vsel %vm1653, %v1638, -inf
        %v1709 = vmax.f32 %v1707, %v1708
        %v1710 = vsel %vm1653, %v1639, -inf
        %v1711 = vmax.f32 %v1709, %v1710
        %v1712 = vsel %vm1659, %v1640, -inf
        %v1713 = vmax.f32 %v1711, %v1712
        %v1714 = vrot.slane %v1713, 4
        %v1715 = vmax.f32 %v1713, %v1714
        %v1716 = vrot.slane %v1715, 2
        %v1717 = vmax.f32 %v1715, %v1716
        %v1718 = vrot.slane %v1717, 1
        %v1719 = vmax.f32 %v1717, %v1718
        %v1720 = vsel %vm1653, %v1641, -inf
        %v1721 = vsel %vm1653, %v1642, -inf
        %v1722 = vmax.f32 %v1720, %v1721
        %v1723 = vsel %vm1653, %v1643, -inf
        %v1724 = vmax.f32 %v1722, %v1723
        %v1725 = vsel %vm1659, %v1644, -inf
        %v1726 = vmax.f32 %v1724, %v1725
        %v1727 = vrot.slane %v1726, 4
        %v1728 = vmax.f32 %v1726, %v1727
        %v1729 = vrot.slane %v1728, 2
        %v1730 = vmax.f32 %v1728, %v1729
        %v1731 = vrot.slane %v1730, 1
        %v1732 = vmax.f32 %v1730, %v1731
        %v1733 = vsel %vm1653, %v1645, -inf
        %v1734 = vsel %vm1653, %v1646, -inf
        %v1735 = vmax.f32 %v1733, %v1734
        %v1736 = vsel %vm1653, %v1647, -inf
        %v1737 = vmax.f32 %v1735, %v1736
        %v1738 = vsel %vm1659, %v1648, -inf
        %v1739 = vmax.f32 %v1737, %v1738
        %v1740 = vrot.slane %v1739, 4
        %v1741 = vmax.f32 %v1739, %v1740
        %v1742 = vrot.slane %v1741, 2
        %v1743 = vmax.f32 %v1741, %v1742
        %v1744 = vrot.slane %v1743, 1
        %v1745 = vmax.f32 %v1743, %v1744
        %v1746 = vsel %vm1653, %v1649, -inf
        %v1747 = vsel %vm1653, %v1650, -inf
        %v1748 = vmax.f32 %v1746, %v1747
        %v1749 = vsel %vm1653, %v1651, -inf
        %v1750 = vmax.f32 %v1748, %v1749
        %v1751 = vsel %vm1659, %v1652, -inf
        %v1752 = vmax.f32 %v1750, %v1751
        %v1753 = vrot.slane %v1752, 4
        %v1754 = vmax.f32 %v1752, %v1753
        %v1755 = vrot.slane %v1754, 2
        %v1756 = vmax.f32 %v1754, %v1755
        %v1757 = vrot.slane %v1756, 1
        %v1758 = vmax.f32 %v1756, %v1757
        %v1759 = vlaneseq
        %v1760 = vshrl.u32 %v1759, 7
        %v1761 = vsub.s32 2, %v1760
        %v1762 = vrot.slane %v624, %v1761
        %1764 = vrot.lane.b32.xlu0 %v1762, 56
        %v1765 = vpop.permute.xlu0 %1764
        %v1767 = vadd.f32 %v1667, %v1765
        %v1768 = vadd.f32 %v1680, %v1765
        %v1769 = vadd.f32 %v1693, %v1765
        %v1770 = vadd.f32 %v1706, %v1765
        %v1771 = vadd.f32 %v1719, %v1765
        %v1772 = vadd.f32 %v1732, %v1765
        %v1773 = vadd.f32 %v1745, %v1765
        %v1774 = vadd.f32 %v1758, %v1765
        %v1775 = vmax.f32 %v1767, 0.0
        %v1776 = vmax.f32 %v1768, 0.0
        %v1777 = vmax.f32 %v1769, 0.0
        %v1778 = vmax.f32 %v1770, 0.0
        %v1779 = vmax.f32 %v1771, 0.0
        %v1780 = vmax.f32 %v1772, 0.0
        %v1781 = vmax.f32 %v1773, 0.0
        %v1782 = vmax.f32 %v1774, 0.0
        %v1791 = vrot.slane %v1146, 7
        %vm1792 = vcmask 1041409
        %v1793 = vsel %vm1792, %v1791, %v1145
        %v1794 = vrot.slane %v1147, 6
        %vm1795 = vcmask 1042434
        %v1796 = vsel %vm1795, %v1794, %v1793
        %v1797 = vrot.slane %v1148, 5
        %vm1798 = vcmask 1043459
        %v1799 = vsel %vm1798, %v1797, %v1796
        %v1800 = vrot.slane %v1149, 4
        %vm1801 = vcmask 1044484
        %v1802 = vsel %vm1801, %v1800, %v1799
        %v1803 = vrot.slane %v1150, 3
        %vm1804 = vcmask 1045509
        %v1805 = vsel %vm1804, %v1803, %v1802
        %v1806 = vrot.slane %v1151, 2
        %vm1807 = vcmask 1046534
        %v1808 = vsel %vm1807, %v1806, %v1805
        %v1809 = vrot.slane %v1152, 1
        %vm1810 = vcmask 1047559
        %v1811 = vsel %vm1810, %v1809, %v1808
        %v1821 = vrot.slane %v1461, 7
        %v1822 = vsel %vm1792, %v1821, %v1460
        %v1823 = vrot.slane %v1462, 6
        %v1824 = vsel %vm1795, %v1823, %v1822
        %v1825 = vrot.slane %v1463, 5
        %v1826 = vsel %vm1798, %v1825, %v1824
        %v1827 = vrot.slane %v1464, 4
        %v1828 = vsel %vm1801, %v1827, %v1826
        %v1829 = vrot.slane %v1465, 3
        %v1830 = vsel %vm1804, %v1829, %v1828
        %v1831 = vrot.slane %v1466, 2
        %v1832 = vsel %vm1807, %v1831, %v1830
        %v1833 = vrot.slane %v1467, 1
        %v1834 = vsel %vm1810, %v1833, %v1832
        %1835 = vrot.lane.b32.xlu0 %v1834, 112
        %v1836 = vpop.permute.xlu0 %1835
        %v1846 = vrot.slane %v1776, 7
        %v1847 = vsel %vm1792, %v1846, %v1775
        %v1848 = vrot.slane %v1777, 6
        %v1849 = vsel %vm1795, %v1848, %v1847
        %v1850 = vrot.slane %v1778, 5
        %v1851 = vsel %vm1798, %v1850, %v1849
        %v1852 = vrot.slane %v1779, 4
        %v1853 = vsel %vm1801, %v1852, %v1851
        %v1854 = vrot.slane %v1780, 3
        %v1855 = vsel %vm1804, %v1854, %v1853
        %v1856 = vrot.slane %v1781, 2
        %v1857 = vsel %vm1807, %v1856, %v1855
        %v1858 = vrot.slane %v1782, 1
        %v1859 = vsel %vm1810, %v1858, %v1857
        %1860 = vrot.lane.b32.xlu0 %v1859, 88
        %v1861 = vpop.permute.xlu0 %1860
        %v1863 = vsel %vm1027, %v1811, %v1836
        %vm1864 = vcmask 130048
        %v1865 = vsel %vm1864, %v1863, %v1861
        %v1866 = vld [vmem:[%s3] sm:$0x1]
        %v1868 = vlaneseq
        %v1869 = vshrl.u32 %v1868, 7
        %v1870 = vsub.s32 0, %v1869
        %v1871 = vrot.slane %v1866, %v1870
        %v1873 = vmul.f32 %v1865, %v1871
        %vm1874 = vcmask 195584
        %v1875 = vsel %vm1874, %v1873, 0.0
        %1876 = vadd.xlane.f32.xlu0 %v1875
        %v1877 = vpop.xlane.xlu0 %1876
        %v1878 = vld [vmem:[#allocation2] sm:$0x1]
        %v1880 = vlaneseq
        %v1881 = vshrl.u32 %v1880, 7
        %v1882 = vsub.s32 0, %v1881
        %v1883 = vrot.slane %v1878, %v1882
        %v1885 = vadd.f32 %v1877, %v1883
        %v1886 = vxor.u32 %v1885, 2147483648
        %v1887 = vmul.f32 %v1886, 1.442695
        %v1888 = vpow.pop %v1887
        %v1889 = vadd.f32 %v1888, 1.0
        %v1890 = vrcp.pop %v1889
        %v1891 = vmul.f32 1.0, %v1890
        %vm1892 = vcmask 7168
        %1893 = vst.msk [vmem:[%s261] sm:$0xff] %vm1892, %v1891
        %p1894 = scmp.lt.s32.totalorder %s22, 1
        %s1895 = scalar_select %p1894, %s22, 1
        %s1896 = smul.addr %s1895, 8
        %s1897 = scalar_lea.vmem %s5, %s1896
        // Predicated region
        $region49: #{tpu_custom_call.1} parent=39 // pred_check
          %p1898 = pneg %p150
        $region50: #{tpu_custom_call.1} parent=39 // pred_check_branch
          %1900 = sbr.rel (%p1898) target = $region52
        $region51: #{tpu_custom_call.1} parent=39 // pred_region
          _
        $region52: #{tpu_custom_call.1} parent=39 // pred_fallthru
          _
      $region40: #{tpu_custom_call.1} parent=5 // pred_fallthru
        _
      %p1901 = scmp.le.s32.totalorder 2, %s17
      // Predicated region
      $region53: #{tpu_custom_call.1} parent=5 // pred_check
        %p1902 = pneg %p1901
      $region54: #{tpu_custom_call.1} parent=5 // pred_check_branch
        %1904 = sbr.rel (%p1902) target = $region56
      $region55: #{tpu_custom_call.1} parent=5 // pred_region
        %s1905 = ssub.s32 %s17, 2
        // Predicated region
        $region57: #{tpu_custom_call.1} parent=55 // pred_check
          %p1906 = pneg %p156
        $region58: #{tpu_custom_call.1} parent=55 // pred_check_branch
          %1908 = sbr.rel (%p1906) target = $region60
        $region59: #{tpu_custom_call.1} parent=55 // pred_region
          %p1909 = scmp.lt.s32.totalorder %s23, 1
          %s1910 = scalar_select %p1909, %s23, 1
          %s1911 = smul.addr %s1910, 8
          %s1912 = scalar_lea.vmem %s5, %s1911
        $region60: #{tpu_custom_call.1} parent=55 // pred_fallthru
          _
      $region56: #{tpu_custom_call.1} parent=5 // pred_fallthru
        _
    $region6: #{tpu_custom_call.1} parent=1 // loop_footer
      %s21 = sadd.s32 1, %s17
    $region7: #{tpu_custom_call.1} parent=1 // loop_footer_branch
      %16 = sbr.rel target = $region3
    $region8: #{tpu_custom_call.1} parent=1 // loop_exit
      _
    %1913 = vsyncpa [#allocation4], 1
    %s1914 = scalar_lea.sflag [#allocation4], 1
    %1915 = vsyncpa %s1914, 1
    %1916 = vsyncpa [#allocation6], 1

</llo_original>
